<compile_context>
chip_gen: v7x
topology: tpu7x:2x2x1
jax: 0.10.0
libtpu: 0.0.40
codegen_flags: <defaults>
</compile_context>

<pallas_src>
import jax
import jax.numpy as jnp
from jax.experimental import pallas as pl
from jax.experimental.pallas import tpu as pltpu


def _softmax_last(x):
    m = jnp.max(x, axis=-1, keepdims=True)
    e = jnp.exp(x - m)
    # EUP approx reciprocal instead of a VPU divide
    return e * pl.reciprocal(jnp.sum(e, axis=-1, keepdims=True), approx=True)


def predictor_kernel(act_ref, val_ref, addmask_ref,
                     w_fused_ref, b_fused_ref, v_ref,
                     rule_out_ref, tok_out_ref, ref_out_ref):
    T, N, F = act_ref.shape
    R = rule_out_ref.shape[2]
    TOK = tok_out_ref.shape[2]
    H = v_ref.shape[1]

    # ---- single fused head matmul over the flattened (T*N, F) operand (MXU) ----
    act2d = act_ref[...].reshape(T * N, F)
    fused = jnp.dot(act2d, w_fused_ref[...],
                    preferred_element_type=jnp.float32) + b_fused_ref[...]   # (T*N, C)

    rule_p = _softmax_last(fused[:, 0:R])                       # (T*N, R)
    tok_p = _softmax_last(fused[:, R:R + TOK])                  # (T*N, TOK)
    sel_p = _softmax_last(fused[:, R + TOK:R + TOK + 3])        # (T*N, 3)
    key = fused[:, R + TOK + 3:R + TOK + 3 + H]                 # (T*N, H) -- PointerNet W1 @ act

    # ---- PointerNet: score(t,n,l) = v . tanh(W1 act[t,n] + (ref @ W2)[n,l]) ----
    # val_ref (= ref @ W2^T) is grid-invariant and was hoisted to the wrapper.
    trans = jnp.tanh(key.reshape(T, N, 1, H) + val_ref[...][None])   # (T, N, L, H)
    scores = jnp.sum(trans * v_ref[...], axis=-1)                    # (T, N, L)
    scores = scores + addmask_ref[...][None]                         # additive padding mask
    ref_p = _softmax_last(scores)                                    # exp(log_softmax) == softmax

    # ---- gate by select probabilities; one multi-timestep store per output ----
    rule_out_ref[...] = (sel_p[:, 0:1] * rule_p).reshape(T, N, R)
    tok_out_ref[...] = (sel_p[:, 1:2] * tok_p).reshape(T, N, TOK)
    ref_out_ref[...] = sel_p[:, 2:3].reshape(T, N, 1) * ref_p


def predictor_forward(params, action_features, reference_features, reference_mask,
                      *, block_t=None):
    L_ast, N, F = action_features.shape
    L_nl, _, RF = reference_features.shape
    rule_size = params['w_rule'].shape[0]
    token_size = params['w_token'].shape[0]
    H = params['w1'].shape[0]
    C = rule_size + token_size + 3 + H

    if block_t is None:
        block_t = L_ast                 # small L_ast: all timesteps in one grid step
    assert L_ast % block_t == 0, "block_t must divide L_ast"

    # ---- grid-invariant prep (plain XLA glue, done once) ----
    # fused head weight: [ rule | token | select | PointerNet W1 ]
    w_fused = jnp.concatenate(
        [params['w_rule'].T, params['w_token'].T,
         params['w_select'].T, params['w1'].T], axis=1)                     # (F, C)
    b_fused = jnp.concatenate(
        [params['b_rule'], params['b_token'], params['b_select'],
         jnp.zeros((H,), jnp.float32)]).reshape(1, C)                       # (1, C)
    # hoisted PointerNet value projection (does not depend on the timestep)
    val_t = jnp.einsum('lnr,hr->nlh', reference_features, params['w2'])     # (N, L_nl, H)
    # hoisted additive mask
    add_mask = (jnp.transpose(reference_mask.astype(jnp.float32), (1, 0)) - 1.0) * 1e10

    args = (action_features, val_t, add_mask,
            w_fused, b_fused, params['v'].reshape(1, H))

    in_specs = [
        pl.BlockSpec((block_t, N, F), lambda i: (i, 0, 0)),
        pl.BlockSpec((N, L_nl, H), lambda i: (0, 0, 0)),
        pl.BlockSpec((N, L_nl), lambda i: (0, 0)),
        pl.BlockSpec((F, C), lambda i: (0, 0)),
        pl.BlockSpec((1, C), lambda i: (0, 0)),
        pl.BlockSpec((1, H), lambda i: (0, 0)),
    ]
    out_specs = [
        pl.BlockSpec((block_t, N, rule_size), lambda i: (i, 0, 0)),
        pl.BlockSpec((block_t, N, token_size), lambda i: (i, 0, 0)),
        pl.BlockSpec((block_t, N, L_nl), lambda i: (i, 0, 0)),
    ]
    out_shape = [
        jax.ShapeDtypeStruct((L_ast, N, rule_size), jnp.float32),
        jax.ShapeDtypeStruct((L_ast, N, token_size), jnp.float32),
        jax.ShapeDtypeStruct((L_ast, N, L_nl), jnp.float32),
    ]

    rule_prob, token_prob, ref_prob = pl.pallas_call(
        predictor_kernel,
        out_shape=out_shape,
        grid=(L_ast // block_t,),
        in_specs=in_specs,
        out_specs=out_specs,
        compiler_params=pltpu.CompilerParams(
            dimension_semantics=("parallel",)),
    )(*args)
    # TODO(synk): eval-mode path of the PyTorch module just slices [-1] of each output.
    return rule_prob, token_prob, ref_prob


def predictor_ref(params, act, ref, mask):
    """Pure-JAX reference mirroring the PyTorch forward."""
    def lin(x, w, b):
        return jnp.einsum('lnf,rf->lnr', x, w) + b
    rule_p = jax.nn.softmax(lin(act, params['w_rule'], params['b_rule']), axis=2)
    tok_p = jax.nn.softmax(lin(act, params['w_token'], params['b_token']), axis=2)
    sel_p = jax.nn.softmax(lin(act, params['w_select'], params['b_select']), axis=2)
    key_t = jnp.einsum('lnf,hf->lnh', act, params['w1'])            # (L_ast, N, H)
    val_t = jnp.einsum('mnr,hr->mnh', ref, params['w2'])            # (L_nl, N, H)
    trans = jnp.tanh(key_t[:, None] + val_t[None])                  # (L_ast, L_nl, N, H)
    scores = jnp.einsum('lmnh,h->lmn', trans, params['v'][0])
    scores = jnp.transpose(scores, (0, 2, 1))                       # (L_ast, N, L_nl)
    m = jnp.transpose(mask.astype(jnp.float32), (1, 0))[None]       # (1, N, L_nl)
    scores = scores + (m - 1.0) * 1e10
    ref_p = jnp.exp(jax.nn.log_softmax(scores, axis=2))
    return (sel_p[..., 0:1] * rule_p,
            sel_p[..., 1:2] * tok_p,
            sel_p[..., 2:3] * ref_p)


if __name__ == "__main__":
    # small, module-consistent shapes
    L_ast, N = 8, 2
    feature_size = 32
    reference_feature_size = 16
    L_nl = 6
    rule_size = 10
    token_size = 12
    hidden_size = 32

    key = jax.random.PRNGKey(0)
    ks = jax.random.split(key, 12)
    params = {
        'w_rule': 0.1 * jax.random.normal(ks[0], (rule_size, feature_size), jnp.float32),
        'b_rule': 0.1 * jax.random.normal(ks[1], (rule_size,), jnp.float32),
        'w_token': 0.1 * jax.random.normal(ks[2], (token_size, feature_size), jnp.float32),
        'b_token': 0.1 * jax.random.normal(ks[3], (token_size,), jnp.float32),
        'w_select': 0.1 * jax.random.normal(ks[4], (3, feature_size), jnp.float32),
        'b_select': 0.1 * jax.random.normal(ks[5], (3,), jnp.float32),
        'w1': 0.1 * jax.random.normal(ks[6], (hidden_size, feature_size), jnp.float32),
        'w2': 0.1 * jax.random.normal(ks[7], (hidden_size, reference_feature_size), jnp.float32),
        'v': 0.1 * jax.random.normal(ks[8], (1, hidden_size), jnp.float32),
    }

    action_features = jax.random.normal(ks[9], (L_ast, N, feature_size), jnp.float32)
    reference_features = jax.random.normal(
        ks[10], (L_nl, N, reference_feature_size), jnp.float32)
    # ragged reference lengths: batch 0 -> 6 valid tokens, batch 1 -> 4 valid tokens
    ref_mask = (jnp.arange(L_nl)[:, None] < jnp.array([6, 4])[None, :]).astype(jnp.float32)

    rule_p, tok_p, ref_p = predictor_forward(
        params, action_features, reference_features, ref_mask)
    jax.block_until_ready((rule_p, tok_p, ref_p))

    r_ref, t_ref, p_ref = predictor_ref(
        params, action_features, reference_features, ref_mask)

    # tolerance relaxed slightly vs f32 reference because of the EUP approx reciprocal
    assert jnp.allclose(rule_p, r_ref, atol=1e-3), "rule_prob mismatch"
    assert jnp.allclose(tok_p, t_ref, atol=1e-3), "token_prob mismatch"
    assert jnp.allclose(ref_p, p_ref, atol=1e-3), "reference_prob mismatch"

    print("KERNEL_OK")
</pallas_src>

<mosaic_0001>
module attributes {stable_mosaic.version = 11 : i64} {
  func.func @predictor_kernel(%arg0: i32, %arg1: memref<8x2x32xf32, #tpu.memory_space<vmem>>, %arg2: memref<2x6x32xf32, #tpu.memory_space<vmem>>, %arg3: memref<2x6xf32, #tpu.memory_space<vmem>>, %arg4: memref<32x57xf32, #tpu.memory_space<vmem>>, %arg5: memref<1x57xf32, #tpu.memory_space<vmem>>, %arg6: memref<1x32xf32, #tpu.memory_space<vmem>>, %arg7: memref<8x2x10xf32, #tpu.memory_space<vmem>>, %arg8: memref<8x2x12xf32, #tpu.memory_space<vmem>>, %arg9: memref<8x2x6xf32, #tpu.memory_space<vmem>>) attributes {dimension_semantics = [#tpu.dimension_semantics<parallel>], iteration_bounds = array<i64: 1>, scalar_prefetch = 0 : i64, scratch_operands = 0 : i64, tpu.core_type = #tpu.core_type<tc>, window_params = [{transform_indices = @transform_0, window_bounds = array<i64: 8, 2, 32>}, {pipeline_mode = #tpu.pipeline_mode<synchronous>, transform_indices = @transform_1, window_bounds = array<i64: 2, 6, 32>}, {pipeline_mode = #tpu.pipeline_mode<synchronous>, transform_indices = @transform_2, window_bounds = array<i64: 2, 6>}, {pipeline_mode = #tpu.pipeline_mode<synchronous>, transform_indices = @transform_3, window_bounds = array<i64: 32, 57>}, {pipeline_mode = #tpu.pipeline_mode<synchronous>, transform_indices = @transform_4, window_bounds = array<i64: 1, 57>}, {pipeline_mode = #tpu.pipeline_mode<synchronous>, transform_indices = @transform_5, window_bounds = array<i64: 1, 32>}, {transform_indices = @transform_6, window_bounds = array<i64: 8, 2, 10>}, {transform_indices = @transform_7, window_bounds = array<i64: 8, 2, 12>}, {transform_indices = @transform_8, window_bounds = array<i64: 8, 2, 6>}]} {
    %c0 = arith.constant 0 : index
    %c0_0 = arith.constant 0 : index
    %c0_1 = arith.constant 0 : index
    %0 = vector.load %arg1[%c0, %c0_0, %c0_1] : memref<8x2x32xf32, #tpu.memory_space<vmem>>, vector<8x2x32xf32>
    %1 = vector.shape_cast %0 : vector<8x2x32xf32> to vector<16x32xf32>
    %c0_2 = arith.constant 0 : index
    %c0_3 = arith.constant 0 : index
    %2 = vector.load %arg4[%c0_2, %c0_3] : memref<32x57xf32, #tpu.memory_space<vmem>>, vector<32x57xf32>
    %cst = arith.constant dense<0.000000e+00> : vector<16x57xf32>
    %3 = tpu.matmul %1, %2, %cst {dimension_numbers = #tpu.dot_dimension_numbers<[1], [0], [0], [1], [0, 0, 1, 1], [], []>} : vector<16x32xf32>, vector<32x57xf32>, vector<16x57xf32> -> vector<16x57xf32>
    %c0_4 = arith.constant 0 : index
    %c0_5 = arith.constant 0 : index
    %4 = vector.load %arg5[%c0_4, %c0_5] : memref<1x57xf32, #tpu.memory_space<vmem>>, vector<1x57xf32>
    %5 = vector.broadcast %4 : vector<1x57xf32> to vector<16x57xf32>
    %6 = arith.addf %3, %5 : vector<16x57xf32>
    %7 = vector.extract_strided_slice %6 {offsets = [0, 0], sizes = [16, 10], strides = [1, 1]} : vector<16x57xf32> to vector<16x10xf32>
    %cst_6 = arith.constant dense<0xFF800000> : vector<16xf32>
    %8 = vector.multi_reduction <maximumf>, %7, %cst_6 [1] : vector<16x10xf32> to vector<16xf32>
    %9 = vector.shape_cast %8 : vector<16xf32> to vector<16x1xf32>
    %10 = vector.broadcast %9 : vector<16x1xf32> to vector<16x10xf32>
    %11 = arith.subf %7, %10 : vector<16x10xf32>
    %12 = math.exp %11 : vector<16x10xf32>
    %cst_7 = arith.constant dense<0.000000e+00> : vector<16xf32>
    %13 = vector.multi_reduction <add>, %12, %cst_7 [1] : vector<16x10xf32> to vector<16xf32>
    %14 = vector.shape_cast %13 : vector<16xf32> to vector<16x1xf32>
    %15 = tpu.reciprocal %14 {approx = true} : vector<16x1xf32> -> vector<16x1xf32>
    %16 = vector.broadcast %15 : vector<16x1xf32> to vector<16x10xf32>
    %17 = arith.mulf %12, %16 : vector<16x10xf32>
    %18 = vector.extract_strided_slice %6 {offsets = [0, 10], sizes = [16, 12], strides = [1, 1]} : vector<16x57xf32> to vector<16x12xf32>
    %cst_8 = arith.constant dense<0xFF800000> : vector<16xf32>
    %19 = vector.multi_reduction <maximumf>, %18, %cst_8 [1] : vector<16x12xf32> to vector<16xf32>
    %20 = vector.shape_cast %19 : vector<16xf32> to vector<16x1xf32>
    %21 = vector.broadcast %20 : vector<16x1xf32> to vector<16x12xf32>
    %22 = arith.subf %18, %21 : vector<16x12xf32>
    %23 = math.exp %22 : vector<16x12xf32>
    %cst_9 = arith.constant dense<0.000000e+00> : vector<16xf32>
    %24 = vector.multi_reduction <add>, %23, %cst_9 [1] : vector<16x12xf32> to vector<16xf32>
    %25 = vector.shape_cast %24 : vector<16xf32> to vector<16x1xf32>
    %26 = tpu.reciprocal %25 {approx = true} : vector<16x1xf32> -> vector<16x1xf32>
    %27 = vector.broadcast %26 : vector<16x1xf32> to vector<16x12xf32>
    %28 = arith.mulf %23, %27 : vector<16x12xf32>
    %29 = vector.extract_strided_slice %6 {offsets = [0, 22], sizes = [16, 3], strides = [1, 1]} : vector<16x57xf32> to vector<16x3xf32>
    %cst_10 = arith.constant dense<0xFF800000> : vector<16xf32>
    %30 = vector.multi_reduction <maximumf>, %29, %cst_10 [1] : vector<16x3xf32> to vector<16xf32>
    %31 = vector.shape_cast %30 : vector<16xf32> to vector<16x1xf32>
    %32 = vector.broadcast %31 : vector<16x1xf32> to vector<16x3xf32>
    %33 = arith.subf %29, %32 : vector<16x3xf32>
    %34 = math.exp %33 : vector<16x3xf32>
    %cst_11 = arith.constant dense<0.000000e+00> : vector<16xf32>
    %35 = vector.multi_reduction <add>, %34, %cst_11 [1] : vector<16x3xf32> to vector<16xf32>
    %36 = vector.shape_cast %35 : vector<16xf32> to vector<16x1xf32>
    %37 = tpu.reciprocal %36 {approx = true} : vector<16x1xf32> -> vector<16x1xf32>
    %38 = vector.broadcast %37 : vector<16x1xf32> to vector<16x3xf32>
    %39 = arith.mulf %34, %38 : vector<16x3xf32>
    %40 = vector.extract_strided_slice %6 {offsets = [0, 25], sizes = [16, 32], strides = [1, 1]} : vector<16x57xf32> to vector<16x32xf32>
    %41 = vector.shape_cast %40 : vector<16x32xf32> to vector<8x2x1x32xf32>
    %c0_12 = arith.constant 0 : index
    %c0_13 = arith.constant 0 : index
    %c0_14 = arith.constant 0 : index
    %42 = vector.load %arg2[%c0_12, %c0_13, %c0_14] : memref<2x6x32xf32, #tpu.memory_space<vmem>>, vector<2x6x32xf32>
    %43 = vector.shape_cast %42 : vector<2x6x32xf32> to vector<1x2x6x32xf32>
    %44 = vector.broadcast %41 : vector<8x2x1x32xf32> to vector<8x2x6x32xf32>
    %45 = vector.broadcast %43 : vector<1x2x6x32xf32> to vector<8x2x6x32xf32>
    %46 = arith.addf %44, %45 : vector<8x2x6x32xf32>
    %47 = math.tanh %46 : vector<8x2x6x32xf32>
    %c0_15 = arith.constant 0 : index
    %c0_16 = arith.constant 0 : index
    %48 = vector.load %arg6[%c0_15, %c0_16] : memref<1x32xf32, #tpu.memory_space<vmem>>, vector<1x32xf32>
    %49 = vector.shape_cast %48 : vector<1x32xf32> to vector<1x1x1x32xf32>
    %50 = vector.broadcast %49 : vector<1x1x1x32xf32> to vector<8x2x6x32xf32>
    %51 = arith.mulf %47, %50 : vector<8x2x6x32xf32>
    %cst_17 = arith.constant dense<0.000000e+00> : vector<8x2x6xf32>
    %52 = vector.multi_reduction <add>, %51, %cst_17 [3] : vector<8x2x6x32xf32> to vector<8x2x6xf32>
    %c0_18 = arith.constant 0 : index
    %c0_19 = arith.constant 0 : index
    %53 = vector.load %arg3[%c0_18, %c0_19] : memref<2x6xf32, #tpu.memory_space<vmem>>, vector<2x6xf32>
    %54 = vector.shape_cast %53 : vector<2x6xf32> to vector<1x2x6xf32>
    %55 = vector.broadcast %54 : vector<1x2x6xf32> to vector<8x2x6xf32>
    %56 = arith.addf %52, %55 : vector<8x2x6xf32>
    %cst_20 = arith.constant dense<0xFF800000> : vector<8x2xf32>
    %57 = vector.multi_reduction <maximumf>, %56, %cst_20 [2] : vector<8x2x6xf32> to vector<8x2xf32>
    %58 = vector.shape_cast %57 : vector<8x2xf32> to vector<8x2x1xf32>
    %59 = vector.broadcast %58 : vector<8x2x1xf32> to vector<8x2x6xf32>
    %60 = arith.subf %56, %59 : vector<8x2x6xf32>
    %61 = math.exp %60 : vector<8x2x6xf32>
    %cst_21 = arith.constant dense<0.000000e+00> : vector<8x2xf32>
    %62 = vector.multi_reduction <add>, %61, %cst_21 [2] : vector<8x2x6xf32> to vector<8x2xf32>
    %63 = vector.shape_cast %62 : vector<8x2xf32> to vector<8x2x1xf32>
    %64 = tpu.reciprocal %63 {approx = true} : vector<8x2x1xf32> -> vector<8x2x1xf32>
    %65 = vector.broadcast %64 : vector<8x2x1xf32> to vector<8x2x6xf32>
    %66 = arith.mulf %61, %65 : vector<8x2x6xf32>
    %67 = vector.extract_strided_slice %39 {offsets = [0, 0], sizes = [16, 1], strides = [1, 1]} : vector<16x3xf32> to vector<16x1xf32>
    %68 = vector.broadcast %67 : vector<16x1xf32> to vector<16x10xf32>
    %69 = arith.mulf %68, %17 : vector<16x10xf32>
    %70 = vector.shape_cast %69 : vector<16x10xf32> to vector<8x2x10xf32>
    %c0_22 = arith.constant 0 : index
    %c0_23 = arith.constant 0 : index
    %c0_24 = arith.constant 0 : index
    %71 = vector.load %arg7[%c0_22, %c0_23, %c0_24] : memref<8x2x10xf32, #tpu.memory_space<vmem>>, vector<8x2x10xf32>
    tpu.vector_store %arg7[%c0_22, %c0_23, %c0_24], %70 {strides = array<i32>} : memref<8x2x10xf32, #tpu.memory_space<vmem>>, vector<8x2x10xf32>,
    %72 = vector.extract_strided_slice %39 {offsets = [0, 1], sizes = [16, 1], strides = [1, 1]} : vector<16x3xf32> to vector<16x1xf32>
    %73 = vector.broadcast %72 : vector<16x1xf32> to vector<16x12xf32>
    %74 = arith.mulf %73, %28 : vector<16x12xf32>
    %75 = vector.shape_cast %74 : vector<16x12xf32> to vector<8x2x12xf32>
    %c0_25 = arith.constant 0 : index
    %c0_26 = arith.constant 0 : index
    %c0_27 = arith.constant 0 : index
    %76 = vector.load %arg8[%c0_25, %c0_26, %c0_27] : memref<8x2x12xf32, #tpu.memory_space<vmem>>, vector<8x2x12xf32>
    tpu.vector_store %arg8[%c0_25, %c0_26, %c0_27], %75 {strides = array<i32>} : memref<8x2x12xf32, #tpu.memory_space<vmem>>, vector<8x2x12xf32>,
    %77 = vector.extract_strided_slice %39 {offsets = [0, 2], sizes = [16, 1], strides = [1, 1]} : vector<16x3xf32> to vector<16x1xf32>
    %78 = vector.shape_cast %77 : vector<16x1xf32> to vector<8x2x1xf32>
    %79 = vector.broadcast %78 : vector<8x2x1xf32> to vector<8x2x6xf32>
    %80 = arith.mulf %79, %66 : vector<8x2x6xf32>
    %c0_28 = arith.constant 0 : index
    %c0_29 = arith.constant 0 : index
    %c0_30 = arith.constant 0 : index
    %81 = vector.load %arg9[%c0_28, %c0_29, %c0_30] : memref<8x2x6xf32, #tpu.memory_space<vmem>>, vector<8x2x6xf32>
    tpu.vector_store %arg9[%c0_28, %c0_29, %c0_30], %80 {strides = array<i32>} : memref<8x2x6xf32, #tpu.memory_space<vmem>>, vector<8x2x6xf32>,
    return
  }
  func.func @transform_0(%arg0: i32) -> (i32, i32, i32) {
    %c0_i32 = arith.constant 0 : i32
    %c0_i32_0 = arith.constant 0 : i32
    %c0_i32_1 = arith.constant 0 : i32
    return %arg0, %c0_i32, %c0_i32_0 : i32, i32, i32
  }
  func.func @transform_1(%arg0: i32) -> (i32, i32, i32) {
    %c0_i32 = arith.constant 0 : i32
    %c0_i32_0 = arith.constant 0 : i32
    %c0_i32_1 = arith.constant 0 : i32
    %c0_i32_2 = arith.constant 0 : i32
    return %c0_i32, %c0_i32_0, %c0_i32_1 : i32, i32, i32
  }
  func.func @transform_2(%arg0: i32) -> (i32, i32) {
    %c0_i32 = arith.constant 0 : i32
    %c0_i32_0 = arith.constant 0 : i32
    %c0_i32_1 = arith.constant 0 : i32
    return %c0_i32, %c0_i32_0 : i32, i32
  }
  func.func @transform_3(%arg0: i32) -> (i32, i32) {
    %c0_i32 = arith.constant 0 : i32
    %c0_i32_0 = arith.constant 0 : i32
    %c0_i32_1 = arith.constant 0 : i32
    return %c0_i32, %c0_i32_0 : i32, i32
  }
  func.func @transform_4(%arg0: i32) -> (i32, i32) {
    %c0_i32 = arith.constant 0 : i32
    %c0_i32_0 = arith.constant 0 : i32
    %c0_i32_1 = arith.constant 0 : i32
    return %c0_i32, %c0_i32_0 : i32, i32
  }
  func.func @transform_5(%arg0: i32) -> (i32, i32) {
    %c0_i32 = arith.constant 0 : i32
    %c0_i32_0 = arith.constant 0 : i32
    %c0_i32_1 = arith.constant 0 : i32
    return %c0_i32, %c0_i32_0 : i32, i32
  }
  func.func @transform_6(%arg0: i32) -> (i32, i32, i32) {
    %c0_i32 = arith.constant 0 : i32
    %c0_i32_0 = arith.constant 0 : i32
    %c0_i32_1 = arith.constant 0 : i32
    return %arg0, %c0_i32, %c0_i32_0 : i32, i32, i32
  }
  func.func @transform_7(%arg0: i32) -> (i32, i32, i32) {
    %c0_i32 = arith.constant 0 : i32
    %c0_i32_0 = arith.constant 0 : i32
    %c0_i32_1 = arith.constant 0 : i32
    return %arg0, %c0_i32, %c0_i32_0 : i32, i32, i32
  }
  func.func @transform_8(%arg0: i32) -> (i32, i32, i32) {
    %c0_i32 = arith.constant 0 : i32
    %c0_i32_0 = arith.constant 0 : i32
    %c0_i32_1 = arith.constant 0 : i32
    return %arg0, %c0_i32, %c0_i32_0 : i32, i32, i32
  }
}

</mosaic_0001>

<llo_original>
// kernel: tpu_custom_call.1
$region0: #{tpu_custom_call.1}
  #allocation0 [shape = 'u32[]', space=smem, size = 0x4, offset = 0x4, fixed_abs, tag = 'smem constant byte address 0x4 - core index']
  #allocation1 [shape = 'u32[144,128]{1,0:T(1,128)}', space=vmem, size = 0x12000, scoped, tag = 'internal scratch']
  %s0 = inlined_call_operand.hbm [shape: f32[8,2,32], index: 0, kind: input, shape index: {}]
  %s1 = inlined_call_operand.vmem [shape: f32[2,6,32], index: 1, kind: input, shape index: {}]
  %s2 = inlined_call_operand.vmem [shape: f32[2,6], index: 2, kind: input, shape index: {}]
  %s3 = inlined_call_operand.vmem [shape: f32[32,57], index: 3, kind: input, shape index: {}]
  %s4 = inlined_call_operand.vmem [shape: f32[1,57], index: 4, kind: input, shape index: {}]
  %s5 = inlined_call_operand.vmem [shape: f32[1,32], index: 5, kind: input, shape index: {}]
  %s6 = inlined_call_operand.hbm [shape: f32[8,2,10], index: 6, kind: output, shape index: {0}]
  %s7 = inlined_call_operand.hbm [shape: f32[8,2,12], index: 7, kind: output, shape index: {1}]
  %s8 = inlined_call_operand.vmem [shape: f32[8,2,6], index: 8, kind: output, shape index: {2}]
  %9 = xla_tuple %s6, %s7, %s8
  %s10 = sld [smem:[#allocation0]]
  $region54: #{tpu_custom_call.1} parent=0
    _
  %s12 = ssub.s32 1, %s10
  %s13 = scalar_select 0, %s12, %s10
  $region1: #{tpu_custom_call.1} parent=0
    #allocation2 [shape = 'u8[8192]{0}', space=vmem, size = 0x2000, scoped, tag = 'input window, operand 0, single buffered']
    #allocation3 [shape = 's32[1]{0}', space=sflag, size = 0x4, scoped, tag = 'scoped memory for tpu_custom_call.1']
    #allocation4 [shape = 's32[1]{0}', space=sflag, size = 0x4, scoped, tag = 'scoped memory for tpu_custom_call.1']
    #allocation5 [shape = 'u8[8192]{0}', space=vmem, size = 0x2000, scoped, tag = 'output window, operand 0, single buffered']
    #allocation6 [shape = 'u8[8192]{0}', space=vmem, size = 0x2000, scoped, tag = 'output window, operand 1, single buffered']
    #allocation7 [shape = 's32[1]{0}', space=sflag, size = 0x4, scoped, tag = 'scoped memory for tpu_custom_call.1']
    %14 = vsyncpa [#allocation3], 0
    %15 = vsyncpa [#allocation4], 0
    %16 = vsyncpa [#allocation7], 0
    // Predicated region
    $region2: #{tpu_custom_call.1} parent=1 // pred_check
      _
    $region3: #{tpu_custom_call.1} parent=1 // pred_check_branch
      %18 = sbr.rel (0) target = $region5
    $region4: #{tpu_custom_call.1} parent=1 // pred_region
      %s20 = ssub.s32 256, 256
      %21 = vsyncadd [#allocation3], %s20
      %s22 = sshll.u32 [#allocation2], 4
      %s23 = int_to_ptr.vmem [resolvable:$true] %s22
      %28 = dma.hbm_to_vmem [thread:$0]  %s0, 256, %s23, [#allocation3], 32, 32, 2
    $region5: #{tpu_custom_call.1} parent=1 // pred_fallthru
      _
    // Predicated region
    $region6: #{tpu_custom_call.1} parent=1 // pred_check
      _
    $region7: #{tpu_custom_call.1} parent=1 // pred_check_branch
      %30 = sbr.rel (0) target = $region9
    $region8: #{tpu_custom_call.1} parent=1 // pred_region
      _
    $region9: #{tpu_custom_call.1} parent=1 // pred_fallthru
      _
    // Predicated region
    $region10: #{tpu_custom_call.1} parent=1 // pred_check
      _
    $region11: #{tpu_custom_call.1} parent=1 // pred_check_branch
      %32 = sbr.rel (0) target = $region13
    $region12: #{tpu_custom_call.1} parent=1 // pred_region
      _
    $region13: #{tpu_custom_call.1} parent=1 // pred_fallthru
      _
    // Predicated region
    $region14: #{tpu_custom_call.1} parent=1 // pred_check
      _
    $region15: #{tpu_custom_call.1} parent=1 // pred_check_branch
      %34 = sbr.rel (0) target = $region17
    $region16: #{tpu_custom_call.1} parent=1 // pred_region
      _
    $region17: #{tpu_custom_call.1} parent=1 // pred_fallthru
      _
    // Predicated region
    $region18: #{tpu_custom_call.1} parent=1 // pred_check
      _
    $region19: #{tpu_custom_call.1} parent=1 // pred_check_branch
      %36 = sbr.rel (0) target = $region21
    $region20: #{tpu_custom_call.1} parent=1 // pred_region
      _
    $region21: #{tpu_custom_call.1} parent=1 // pred_fallthru
      _
    // Predicated region
    $region22: #{tpu_custom_call.1} parent=1 // pred_check
      _
    $region23: #{tpu_custom_call.1} parent=1 // pred_check_branch
      %38 = sbr.rel (0) target = $region25
    $region24: #{tpu_custom_call.1} parent=1 // pred_region
      _
    $region25: #{tpu_custom_call.1} parent=1 // pred_fallthru
      _
    // Predicated region
    $region26: #{tpu_custom_call.1} parent=1 // pred_check
      _
    $region27: #{tpu_custom_call.1} parent=1 // pred_check_branch
      %40 = sbr.rel (0) target = $region29
    $region28: #{tpu_custom_call.1} parent=1 // pred_region
      %41 = dma.done [#allocation3], 256
    $region29: #{tpu_custom_call.1} parent=1 // pred_fallthru
      _
    %v42 = vld [vmem:[#allocation2] sm:$0x3]
    %v43 = vld [vmem:[#allocation2 + $0x2] sm:$0x3]
    %v44 = vld [vmem:[#allocation2 + $0x4] sm:$0x3]
    %v45 = vld [vmem:[#allocation2 + $0x6] sm:$0x3]
    %v46 = vld [vmem:[#allocation2 + $0x8] sm:$0x3]
    %v47 = vld [vmem:[#allocation2 + $0xa] sm:$0x3]
    %v48 = vld [vmem:[#allocation2 + $0xc] sm:$0x3]
    %v49 = vld [vmem:[#allocation2 + $0xe] sm:$0x3]
    %v50 = vld [vmem:[%s3] sm:$0xff]
    %v51 = vld [vmem:[%s3 + $0x8] sm:$0xff]
    %v52 = vld [vmem:[%s3 + $0x10] sm:$0xff]
    %v53 = vld [vmem:[%s3 + $0x18] sm:$0xff]
    %v54 = vld [vmem:[%s4] sm:$0x1]
    %v56 = vlaneseq
    %v57 = vshrl.u32 %v56, 7
    %v58 = vsub.s32 0, %v57
    %v59 = vrot.slane %v54, %v58
    %v69 = vcombine.low %v42, %v43
    %v70 = vcombine.low %v44, %v45
    %v72 = vunpack.c.l.s4 1983009808
    %v73 = vunpack.c.0.s8 %v72
    %v74 = vlaneseq
    %v75 = vshrl.u32 %v74, 7
    %v76 = vsub.s32 %v73, %v75
    %v77 = vrot.slane %v69, %v76
    %v79 = vunpack.c.l.s4 1983009808
    %v80 = vunpack.c.0.s8 %v79
    %v81 = vlaneseq
    %v82 = vshrl.u32 %v81, 7
    %v83 = vsub.s32 %v80, %v82
    %v84 = vrot.slane %v70, %v83
    %v85 = vcombine.low %v77, %v84
    %v86 = vcombine.low %v46, %v47
    %v87 = vcombine.low %v48, %v49
    %v89 = vunpack.c.l.s4 1983009808
    %v90 = vunpack.c.0.s8 %v89
    %v91 = vlaneseq
    %v92 = vshrl.u32 %v91, 7
    %v93 = vsub.s32 %v90, %v92
    %v94 = vrot.slane %v86, %v93
    %v96 = vunpack.c.l.s4 1983009808
    %v97 = vunpack.c.0.s8 %v96
    %v98 = vlaneseq
    %v99 = vshrl.u32 %v98, 7
    %v100 = vsub.s32 %v97, %v99
    %v101 = vrot.slane %v87, %v100
    %v102 = vcombine.low %v94, %v101
    %vm103 = vcmask 261120
    %v104 = vsel %vm103, %v85, 0
    %v106 = vsel %vm103, %v102, 0
    %108 = vmatprep.subr.mxu0 0.0
    %109 = vmatpush1.msra.mxu0 %v50
    %110 = vmatprep.subr.mxu0 0.0
    %111 = vmatpush1.msra.mxu0 %v51
    %112 = vmatprep.subr.mxu0 0.0
    %113 = vmatpush1.msra.mxu0 %v52
    %114 = vmatprep.subr.mxu0 0.0
    %115 = vmatpush1.msra.mxu0 %v53
    %116 = vmatprep.subr.mxu0 0.0
    %117 = vmatpush1.msra.mxu0 0.0
    %118 = vmatprep.subr.mxu0 0.0
    %119 = vmatpush1.msra.mxu0 0.0
    %120 = vmatprep.subr.mxu0 0.0
    %121 = vmatpush1.msra.mxu0 0.0
    %122 = vmatprep.subr.mxu0 0.0
    %123 = vmatpush1.msra.mxu0 0.0
    %124 = vmatprep.subr.mxu0 0.0
    %125 = vmatpush1.msra.mxu0 0.0
    %126 = vmatprep.subr.mxu0 0.0
    %127 = vmatpush1.msra.mxu0 0.0
    %128 = vmatprep.subr.mxu0 0.0
    %129 = vmatpush1.msra.mxu0 0.0
    %130 = vmatprep.subr.mxu0 0.0
    %131 = vmatpush1.msra.mxu0 0.0
    %132 = vmatprep.subr.mxu0 0.0
    %133 = vmatpush1.msra.mxu0 0.0
    %134 = vmatprep.subr.mxu0 0.0
    %135 = vmatpush1.msra.mxu0 0.0
    %136 = vmatprep.subr.mxu0 0.0
    %137 = vmatpush1.msra.mxu0 0.0
    %138 = vmatprep.subr.mxu0 0.0
    %139 = vmatpush1.msra.mxu0 0.0
    %140 = vmatprep.subr.mxu0 0.0
    %141 = vmatpush1.msra.mxu0 0.0
    %142 = vmatprep.subr.mxu0 0.0
    %143 = vmatpush1.msra.mxu0 0.0
    %144 = vmatprep.subr.mxu0 0.0
    %145 = vmatpush1.msra.mxu0 0.0
    %146 = vmatprep.subr.mxu0 0.0
    %147 = vmatpush1.msra.mxu0 0.0
    %148 = vmatprep.subr.mxu0 0.0
    %149 = vmatpush1.msra.mxu0 0.0
    %150 = vmatprep.subr.mxu0 0.0
    %151 = vmatpush1.msra.mxu0 0.0
    %152 = vmatprep.subr.mxu0 0.0
    %153 = vmatpush1.msra.mxu0 0.0
    %154 = vmatprep.subr.mxu0 0.0
    %155 = vmatpush1.msra.mxu0 0.0
    %156 = vmatprep.subr.mxu0 0.0
    %157 = vmatpush1.msra.mxu0 0.0
    %158 = vmatprep.subr.mxu0 0.0
    %159 = vmatpush1.msra.mxu0 0.0
    %160 = vmatprep.subr.mxu0 0.0
    %161 = vmatpush1.msra.mxu0 0.0
    %162 = vmatprep.subr.mxu0 0.0
    %163 = vmatpush1.msra.mxu0 0.0
    %164 = vmatprep.subr.mxu0 0.0
    %165 = vmatpush1.msra.mxu0 0.0
    %166 = vmatprep.subr.mxu0 0.0
    %167 = vmatpush1.msra.mxu0 0.0
    %168 = vmatprep.subr.mxu0 0.0
    %169 = vmatpush1.msra.mxu0 0.0
    %170 = vmatprep.subr.mxu0 0.0
    %171 = vmatpush1.msra.mxu0 0.0
    %172 = vmatprep.mubr.f32.mxu0 0.0
    %173 = vmatmul.mubr.f32.gmra.mrb[0].mxu0 %v104
    %v174 = vpop.f32.mrb[0].mxu0
    %v175 = vadd.f32 %v59, %v174
    %v176 = vpop.f32.mrb[0].mxu0
    %177 = vmatprep.mubr.f32.mxu0 0.0
    %178 = vmatmul.mubr.f32.gmra.mrb[0].mxu0 %v106
    %v179 = vpop.f32.mrb[0].mxu0
    %v180 = vadd.f32 %v59, %v179
    %v181 = vpop.f32.mrb[0].mxu0
    %182 = vdwg.mxu0
    %vm183 = vcmask 80896
    %v184 = vsel %vm183, %v175, -inf
    %185 = vmax.xlane.f32.xlu0 %v184
    %v186 = vpop.xlane.xlu0 %185
    %v187 = vsel %vm183, %v180, -inf
    %188 = vmax.xlane.f32.xlu0 %v187
    %v189 = vpop.xlane.xlu0 %188
    %v190 = vsub.f32 %v175, %v186
    %v191 = vsub.f32 %v180, %v189
    %v192 = vmul.f32 %v190, 1.442695
    %v193 = vpow.pop %v192
    %v194 = vmul.f32 %v191, 1.442695
    %v195 = vpow.pop %v194
    %v196 = vsel %vm183, %v193, 0.0
    %197 = vadd.xlane.f32.xlu0 %v196
    %v198 = vpop.xlane.xlu0 %197
    %v199 = vsel %vm183, %v195, 0.0
    %200 = vadd.xlane.f32.xlu0 %v199
    %v201 = vpop.xlane.xlu0 %200
    %v202 = vrcp.pop %v198
    %v203 = vrcp.pop %v201
    %v204 = vmul.f32 %v193, %v202
    %v205 = vmul.f32 %v195, %v203
    %vm206 = vcmask 179280
    %v207 = vsel %vm206, %v175, -inf
    %208 = vmax.xlane.f32.xlu0 %v207
    %v209 = vpop.xlane.xlu0 %208
    %v210 = vsel %vm206, %v180, -inf
    %211 = vmax.xlane.f32.xlu0 %v210
    %v212 = vpop.xlane.xlu0 %211
    %v213 = vsub.f32 %v175, %v209
    %v214 = vsub.f32 %v180, %v212
    %v215 = vmul.f32 %v213, 1.442695
    %v216 = vpow.pop %v215
    %v217 = vmul.f32 %v214, 1.442695
    %v218 = vpow.pop %v217
    %221 = vrot.lane.b32.xlu0 %v216, 118
    %v222 = vpop.permute.xlu0 %221
    %223 = vrot.lane.b32.xlu0 %v218, 118
    %v224 = vpop.permute.xlu0 %223
    %vm227 = vcmask 97280
    %v228 = vsel %vm227, %v222, 0.0
    %229 = vadd.xlane.f32.xlu0 %v228
    %v230 = vpop.xlane.xlu0 %229
    %v231 = vsel %vm227, %v224, 0.0
    %232 = vadd.xlane.f32.xlu0 %v231
    %v233 = vpop.xlane.xlu0 %232
    %v234 = vrcp.pop %v230
    %v235 = vrcp.pop %v233
    %v236 = vmul.f32 %v216, %v234
    %v237 = vmul.f32 %v218, %v235
    %vm238 = vcmask 203952
    %v239 = vsel %vm238, %v175, -inf
    %240 = vmax.xlane.f32.xlu0 %v239
    %v241 = vpop.xlane.xlu0 %240
    %v242 = vsel %vm238, %v180, -inf
    %243 = vmax.xlane.f32.xlu0 %v242
    %v244 = vpop.xlane.xlu0 %243
    %v245 = vsub.f32 %v175, %v241
    %v246 = vsub.f32 %v180, %v244
    %v247 = vmul.f32 %v245, 1.442695
    %v248 = vpow.pop %v247
    %v249 = vmul.f32 %v246, 1.442695
    %v250 = vpow.pop %v249
    %253 = vrot.lane.b32.xlu0 %v248, 106
    %v254 = vpop.permute.xlu0 %253
    %255 = vrot.lane.b32.xlu0 %v250, 106
    %v256 = vpop.permute.xlu0 %255
    %vm259 = vcmask 23552
    %v260 = vsel %vm259, %v254, 0.0
    %261 = vadd.xlane.f32.xlu0 %v260
    %v262 = vpop.xlane.xlu0 %261
    %v263 = vsel %vm259, %v256, 0.0
    %264 = vadd.xlane.f32.xlu0 %v263
    %v265 = vpop.xlane.xlu0 %264
    %v266 = vrcp.pop %v262
    %v267 = vrcp.pop %v265
    %v268 = vmul.f32 %v248, %v266
    %v269 = vmul.f32 %v250, %v267
    %v272 = vcombine.high %v175, %v175
    %v274 = vunpack.c.l.s4 1966171168
    %v275 = vunpack.c.0.s8 %v274
    %v276 = vlaneseq
    %v277 = vshrl.u32 %v276, 7
    %v278 = vsub.s32 %v275, %v277
    %v279 = vrot.slane %v175, %v278
    %v281 = vunpack.c.l.s4 1966171168
    %v282 = vunpack.c.0.s8 %v281
    %v283 = vlaneseq
    %v284 = vshrl.u32 %v283, 7
    %v285 = vsub.s32 %v282, %v284
    %v286 = vrot.slane %v272, %v285
    %v287 = vcombine.high %v279, %v279
    %v288 = vcombine.high %v286, %v286
    %v290 = vunpack.c.l.s4 1966171168
    %v291 = vunpack.c.0.s8 %v290
    %v292 = vlaneseq
    %v293 = vshrl.u32 %v292, 7
    %v294 = vsub.s32 %v291, %v293
    %v295 = vrot.slane %v279, %v294
    %v297 = vunpack.c.l.s4 1966171168
    %v298 = vunpack.c.0.s8 %v297
    %v299 = vlaneseq
    %v300 = vshrl.u32 %v299, 7
    %v301 = vsub.s32 %v298, %v300
    %v302 = vrot.slane %v286, %v301
    %v304 = vunpack.c.l.s4 1966171168
    %v305 = vunpack.c.0.s8 %v304
    %v306 = vlaneseq
    %v307 = vshrl.u32 %v306, 7
    %v308 = vsub.s32 %v305, %v307
    %v309 = vrot.slane %v287, %v308
    %v311 = vunpack.c.l.s4 1966171168
    %v312 = vunpack.c.0.s8 %v311
    %v313 = vlaneseq
    %v314 = vshrl.u32 %v313, 7
    %v315 = vsub.s32 %v312, %v314
    %v316 = vrot.slane %v288, %v315
    %v317 = vcombine.high %v295, %v295
    %v318 = vcombine.high %v302, %v302
    %v319 = vcombine.high %v309, %v309
    %v320 = vcombine.high %v316, %v316
    %v321 = vcombine.high %v180, %v180
    %v323 = vunpack.c.l.s4 1966171168
    %v324 = vunpack.c.0.s8 %v323
    %v325 = vlaneseq
    %v326 = vshrl.u32 %v325, 7
    %v327 = vsub.s32 %v324, %v326
    %v328 = vrot.slane %v180, %v327
    %v330 = vunpack.c.l.s4 1966171168
    %v331 = vunpack.c.0.s8 %v330
    %v332 = vlaneseq
    %v333 = vshrl.u32 %v332, 7
    %v334 = vsub.s32 %v331, %v333
    %v335 = vrot.slane %v321, %v334
    %v336 = vcombine.high %v328, %v328
    %v337 = vcombine.high %v335, %v335
    %v339 = vunpack.c.l.s4 1966171168
    %v340 = vunpack.c.0.s8 %v339
    %v341 = vlaneseq
    %v342 = vshrl.u32 %v341, 7
    %v343 = vsub.s32 %v340, %v342
    %v344 = vrot.slane %v328, %v343
    %v346 = vunpack.c.l.s4 1966171168
    %v347 = vunpack.c.0.s8 %v346
    %v348 = vlaneseq
    %v349 = vshrl.u32 %v348, 7
    %v350 = vsub.s32 %v347, %v349
    %v351 = vrot.slane %v335, %v350
    %v353 = vunpack.c.l.s4 1966171168
    %v354 = vunpack.c.0.s8 %v353
    %v355 = vlaneseq
    %v356 = vshrl.u32 %v355, 7
    %v357 = vsub.s32 %v354, %v356
    %v358 = vrot.slane %v336, %v357
    %v360 = vunpack.c.l.s4 1966171168
    %v361 = vunpack.c.0.s8 %v360
    %v362 = vlaneseq
    %v363 = vshrl.u32 %v362, 7
    %v364 = vsub.s32 %v361, %v363
    %v365 = vrot.slane %v337, %v364
    %v366 = vcombine.high %v344, %v344
    %v367 = vcombine.high %v351, %v351
    %v368 = vcombine.high %v358, %v358
    %v369 = vcombine.high %v365, %v365
    %v370 = vld [vmem:[%s1] sm:$0x3f]
    %v371 = vld [vmem:[%s1 + $0x8] sm:$0x3f]
    %v372 = vlaneseq
    %v373 = vshrl.u32 %v372, 7
    %v374 = vsub.s32 0, %v373
    %v375 = vrot.slane %v295, %v374
    %v376 = vlaneseq
    %v377 = vshrl.u32 %v376, 7
    %v378 = vsub.s32 0, %v377
    %v379 = vrot.slane %v309, %v378
    %v380 = vlaneseq
    %v381 = vshrl.u32 %v380, 7
    %v382 = vsub.s32 0, %v381
    %v383 = vrot.slane %v317, %v382
    %v384 = vlaneseq
    %v385 = vshrl.u32 %v384, 7
    %v386 = vsub.s32 0, %v385
    %v387 = vrot.slane %v319, %v386
    %v388 = vlaneseq
    %v389 = vshrl.u32 %v388, 7
    %v390 = vsub.s32 0, %v389
    %v391 = vrot.slane %v302, %v390
    %v392 = vlaneseq
    %v393 = vshrl.u32 %v392, 7
    %v394 = vsub.s32 0, %v393
    %v395 = vrot.slane %v316, %v394
    %v396 = vlaneseq
    %v397 = vshrl.u32 %v396, 7
    %v398 = vsub.s32 0, %v397
    %v399 = vrot.slane %v318, %v398
    %v400 = vlaneseq
    %v401 = vshrl.u32 %v400, 7
    %v402 = vsub.s32 0, %v401
    %v403 = vrot.slane %v320, %v402
    %v404 = vlaneseq
    %v405 = vshrl.u32 %v404, 7
    %v406 = vsub.s32 0, %v405
    %v407 = vrot.slane %v344, %v406
    %v408 = vlaneseq
    %v409 = vshrl.u32 %v408, 7
    %v410 = vsub.s32 0, %v409
    %v411 = vrot.slane %v358, %v410
    %v412 = vlaneseq
    %v413 = vshrl.u32 %v412, 7
    %v414 = vsub.s32 0, %v413
    %v415 = vrot.slane %v366, %v414
    %v416 = vlaneseq
    %v417 = vshrl.u32 %v416, 7
    %v418 = vsub.s32 0, %v417
    %v419 = vrot.slane %v368, %v418
    %v420 = vlaneseq
    %v421 = vshrl.u32 %v420, 7
    %v422 = vsub.s32 0, %v421
    %v423 = vrot.slane %v351, %v422
    %v424 = vlaneseq
    %v425 = vshrl.u32 %v424, 7
    %v426 = vsub.s32 0, %v425
    %v427 = vrot.slane %v365, %v426
    %v428 = vlaneseq
    %v429 = vshrl.u32 %v428, 7
    %v430 = vsub.s32 0, %v429
    %v431 = vrot.slane %v367, %v430
    %v432 = vlaneseq
    %v433 = vshrl.u32 %v432, 7
    %v434 = vsub.s32 0, %v433
    %v435 = vrot.slane %v369, %v434
    %454 = vrot.lane.b32.xlu0 %v370, 25
    %v455 = vpop.permute.xlu0 %454
    %456 = vrot.lane.b32.xlu0 %v371, 25
    %v457 = vpop.permute.xlu0 %456
    %v460 = vadd.f32 %v375, %v455
    %v461 = vadd.f32 %v379, %v457
    %v462 = vadd.f32 %v383, %v455
    %v463 = vadd.f32 %v387, %v457
    %v464 = vadd.f32 %v391, %v455
    %v465 = vadd.f32 %v395, %v457
    %v466 = vadd.f32 %v399, %v455
    %v467 = vadd.f32 %v403, %v457
    %v468 = vadd.f32 %v407, %v455
    %v469 = vadd.f32 %v411, %v457
    %v470 = vadd.f32 %v415, %v455
    %v471 = vadd.f32 %v419, %v457
    %v472 = vadd.f32 %v423, %v455
    %v473 = vadd.f32 %v427, %v457
    %v474 = vadd.f32 %v431, %v455
    %v475 = vadd.f32 %v435, %v457
    %v476 = vtanh.pop %v460
    %v477 = vtanh.pop %v461
    %v478 = vtanh.pop %v462
    %v479 = vtanh.pop %v463
    %v480 = vtanh.pop %v464
    %v481 = vtanh.pop %v465
    %v482 = vtanh.pop %v466
    %v483 = vtanh.pop %v467
    %v484 = vtanh.pop %v468
    %v485 = vtanh.pop %v469
    %v486 = vtanh.pop %v470
    %v487 = vtanh.pop %v471
    %v488 = vtanh.pop %v472
    %v489 = vtanh.pop %v473
    %v490 = vtanh.pop %v474
    %v491 = vtanh.pop %v475
    %v492 = vld [vmem:[%s5] sm:$0x1]
    %v494 = vlaneseq
    %v495 = vshrl.u32 %v494, 7
    %v496 = vsub.s32 0, %v495
    %v497 = vrot.slane %v492, %v496
    %498 = vrot.lane.b32.xlu0 %v497, 25
    %v499 = vpop.permute.xlu0 %498
    %v501 = vmul.f32 %v476, %v499
    %v502 = vmul.f32 %v477, %v499
    %v503 = vmul.f32 %v478, %v499
    %v504 = vmul.f32 %v479, %v499
    %v505 = vmul.f32 %v480, %v499
    %v506 = vmul.f32 %v481, %v499
    %v507 = vmul.f32 %v482, %v499
    %v508 = vmul.f32 %v483, %v499
    %v509 = vmul.f32 %v484, %v499
    %v510 = vmul.f32 %v485, %v499
    %v511 = vmul.f32 %v486, %v499
    %v512 = vmul.f32 %v487, %v499
    %v513 = vmul.f32 %v488, %v499
    %v514 = vmul.f32 %v489, %v499
    %v515 = vmul.f32 %v490, %v499
    %v516 = vmul.f32 %v491, %v499
    %533 = vrot.lane.b32.xlu0 %v501, 103
    %v534 = vpop.permute.xlu0 %533
    %535 = vrot.lane.b32.xlu0 %v502, 103
    %v536 = vpop.permute.xlu0 %535
    %537 = vrot.lane.b32.xlu0 %v503, 103
    %v538 = vpop.permute.xlu0 %537
    %539 = vrot.lane.b32.xlu0 %v504, 103
    %v540 = vpop.permute.xlu0 %539
    %541 = vrot.lane.b32.xlu0 %v505, 103
    %v542 = vpop.permute.xlu0 %541
    %543 = vrot.lane.b32.xlu0 %v506, 103
    %v544 = vpop.permute.xlu0 %543
    %545 = vrot.lane.b32.xlu0 %v507, 103
    %v546 = vpop.permute.xlu0 %545
    %547 = vrot.lane.b32.xlu0 %v508, 103
    %v548 = vpop.permute.xlu0 %547
    %549 = vrot.lane.b32.xlu0 %v509, 103
    %v550 = vpop.permute.xlu0 %549
    %551 = vrot.lane.b32.xlu0 %v510, 103
    %v552 = vpop.permute.xlu0 %551
    %553 = vrot.lane.b32.xlu0 %v511, 103
    %v554 = vpop.permute.xlu0 %553
    %555 = vrot.lane.b32.xlu0 %v512, 103
    %v556 = vpop.permute.xlu0 %555
    %557 = vrot.lane.b32.xlu0 %v513, 103
    %v558 = vpop.permute.xlu0 %557
    %559 = vrot.lane.b32.xlu0 %v514, 103
    %v560 = vpop.permute.xlu0 %559
    %561 = vrot.lane.b32.xlu0 %v515, 103
    %v562 = vpop.permute.xlu0 %561
    %563 = vrot.lane.b32.xlu0 %v516, 103
    %v564 = vpop.permute.xlu0 %563
    %vm581 = vcmask 259072
    %v582 = vsel %vm581, %v534, 0.0
    %583 = vadd.xlane.f32.xlu0 %v582
    %v584 = vpop.xlane.xlu0 %583
    %v585 = vsel %vm581, %v536, 0.0
    %586 = vadd.xlane.f32.xlu0 %v585
    %v587 = vpop.xlane.xlu0 %586
    %v588 = vsel %vm581, %v538, 0.0
    %589 = vadd.xlane.f32.xlu0 %v588
    %v590 = vpop.xlane.xlu0 %589
    %v591 = vsel %vm581, %v540, 0.0
    %592 = vadd.xlane.f32.xlu0 %v591
    %v593 = vpop.xlane.xlu0 %592
    %v594 = vsel %vm581, %v542, 0.0
    %595 = vadd.xlane.f32.xlu0 %v594
    %v596 = vpop.xlane.xlu0 %595
    %v597 = vsel %vm581, %v544, 0.0
    %598 = vadd.xlane.f32.xlu0 %v597
    %v599 = vpop.xlane.xlu0 %598
    %v600 = vsel %vm581, %v546, 0.0
    %601 = vadd.xlane.f32.xlu0 %v600
    %v602 = vpop.xlane.xlu0 %601
    %v603 = vsel %vm581, %v548, 0.0
    %604 = vadd.xlane.f32.xlu0 %v603
    %v605 = vpop.xlane.xlu0 %604
    %v606 = vsel %vm581, %v550, 0.0
    %607 = vadd.xlane.f32.xlu0 %v606
    %v608 = vpop.xlane.xlu0 %607
    %v609 = vsel %vm581, %v552, 0.0
    %610 = vadd.xlane.f32.xlu0 %v609
    %v611 = vpop.xlane.xlu0 %610
    %v612 = vsel %vm581, %v554, 0.0
    %613 = vadd.xlane.f32.xlu0 %v612
    %v614 = vpop.xlane.xlu0 %613
    %v615 = vsel %vm581, %v556, 0.0
    %616 = vadd.xlane.f32.xlu0 %v615
    %v617 = vpop.xlane.xlu0 %616
    %v618 = vsel %vm581, %v558, 0.0
    %619 = vadd.xlane.f32.xlu0 %v618
    %v620 = vpop.xlane.xlu0 %619
    %v621 = vsel %vm581, %v560, 0.0
    %622 = vadd.xlane.f32.xlu0 %v621
    %v623 = vpop.xlane.xlu0 %622
    %v624 = vsel %vm581, %v562, 0.0
    %625 = vadd.xlane.f32.xlu0 %v624
    %v626 = vpop.xlane.xlu0 %625
    %v627 = vsel %vm581, %v564, 0.0
    %628 = vadd.xlane.f32.xlu0 %v627
    %v629 = vpop.xlane.xlu0 %628
    %v630 = vld [vmem:[%s2] sm:$0x3]
    %v632 = vlaneseq
    %v633 = vshrl.u32 %v632, 7
    %v634 = vsub.s32 0, %v633
    %v635 = vrot.slane %v630, %v634
    %637 = vbcast.lane.b32.xlu0 %v635, 256
    %v638 = vpop.permute.xlu0 %637
    %v639 = vlaneseq
    %v640 = vshrl.u32 %v639, 7
    %v641 = vsub.s32 1, %v640
    %v642 = vrot.slane %v630, %v641
    %644 = vbcast.lane.b32.xlu0 %v642, 256
    %v645 = vpop.permute.xlu0 %644
    %v648 = vadd.f32 %v584, %v638
    %v649 = vadd.f32 %v587, %v645
    %v650 = vadd.f32 %v590, %v638
    %v651 = vadd.f32 %v593, %v645
    %v652 = vadd.f32 %v596, %v638
    %v653 = vadd.f32 %v599, %v645
    %v654 = vadd.f32 %v602, %v638
    %v655 = vadd.f32 %v605, %v645
    %v656 = vadd.f32 %v608, %v638
    %v657 = vadd.f32 %v611, %v645
    %v658 = vadd.f32 %v614, %v638
    %v659 = vadd.f32 %v617, %v645
    %v660 = vadd.f32 %v620, %v638
    %v661 = vadd.f32 %v623, %v645
    %v662 = vadd.f32 %v626, %v638
    %v663 = vadd.f32 %v629, %v645
    %680 = vset.pattern.permute.xlu0 0
    %681 = vperm.xlu0 %680, %v648
    %v682 = vpop.permute.xlu0 %681
    %683 = vset.pattern.permute.xlu0 0
    %684 = vperm.xlu0 %683, %v649
    %v685 = vpop.permute.xlu0 %684
    %686 = vset.pattern.permute.xlu0 0
    %687 = vperm.xlu0 %686, %v650
    %v688 = vpop.permute.xlu0 %687
    %689 = vset.pattern.permute.xlu0 0
    %690 = vperm.xlu0 %689, %v651
    %v691 = vpop.permute.xlu0 %690
    %692 = vset.pattern.permute.xlu0 0
    %693 = vperm.xlu0 %692, %v652
    %v694 = vpop.permute.xlu0 %693
    %695 = vset.pattern.permute.xlu0 0
    %696 = vperm.xlu0 %695, %v653
    %v697 = vpop.permute.xlu0 %696
    %698 = vset.pattern.permute.xlu0 0
    %699 = vperm.xlu0 %698, %v654
    %v700 = vpop.permute.xlu0 %699
    %701 = vset.pattern.permute.xlu0 0
    %702 = vperm.xlu0 %701, %v655
    %v703 = vpop.permute.xlu0 %702
    %704 = vset.pattern.permute.xlu0 0
    %705 = vperm.xlu0 %704, %v656
    %v706 = vpop.permute.xlu0 %705
    %707 = vset.pattern.permute.xlu0 0
    %708 = vperm.xlu0 %707, %v657
    %v709 = vpop.permute.xlu0 %708
    %710 = vset.pattern.permute.xlu0 0
    %711 = vperm.xlu0 %710, %v658
    %v712 = vpop.permute.xlu0 %711
    %713 = vset.pattern.permute.xlu0 0
    %714 = vperm.xlu0 %713, %v659
    %v715 = vpop.permute.xlu0 %714
    %716 = vset.pattern.permute.xlu0 0
    %717 = vperm.xlu0 %716, %v660
    %v718 = vpop.permute.xlu0 %717
    %719 = vset.pattern.permute.xlu0 0
    %720 = vperm.xlu0 %719, %v661
    %v721 = vpop.permute.xlu0 %720
    %722 = vset.pattern.permute.xlu0 0
    %723 = vperm.xlu0 %722, %v662
    %v724 = vpop.permute.xlu0 %723
    %725 = vset.pattern.permute.xlu0 0
    %726 = vperm.xlu0 %725, %v663
    %v727 = vpop.permute.xlu0 %726
    %v728 = vlaneseq
    %v729 = vand.u32 %v728, 127
    %v730 = vlaneseq
    %v731 = vshrl.u32 %v730, 7
    %v732 = vsub.s32 %v729, %v731
    %v733 = vrot.slane %v682, %v732
    %v734 = vlaneseq
    %v735 = vshrl.u32 %v734, 7
    %v736 = vsub.s32 %v729, %v735
    %v737 = vrot.slane %v685, %v736
    %v738 = vlaneseq
    %v739 = vshrl.u32 %v738, 7
    %v740 = vsub.s32 %v729, %v739
    %v741 = vrot.slane %v688, %v740
    %v742 = vlaneseq
    %v743 = vshrl.u32 %v742, 7
    %v744 = vsub.s32 %v729, %v743
    %v745 = vrot.slane %v691, %v744
    %v746 = vlaneseq
    %v747 = vshrl.u32 %v746, 7
    %v748 = vsub.s32 %v729, %v747
    %v749 = vrot.slane %v694, %v748
    %v750 = vlaneseq
    %v751 = vshrl.u32 %v750, 7
    %v752 = vsub.s32 %v729, %v751
    %v753 = vrot.slane %v697, %v752
    %v754 = vlaneseq
    %v755 = vshrl.u32 %v754, 7
    %v756 = vsub.s32 %v729, %v755
    %v757 = vrot.slane %v700, %v756
    %v758 = vlaneseq
    %v759 = vshrl.u32 %v758, 7
    %v760 = vsub.s32 %v729, %v759
    %v761 = vrot.slane %v703, %v760
    %v762 = vlaneseq
    %v763 = vshrl.u32 %v762, 7
    %v764 = vsub.s32 %v729, %v763
    %v765 = vrot.slane %v706, %v764
    %v766 = vlaneseq
    %v767 = vshrl.u32 %v766, 7
    %v768 = vsub.s32 %v729, %v767
    %v769 = vrot.slane %v709, %v768
    %v770 = vlaneseq
    %v771 = vshrl.u32 %v770, 7
    %v772 = vsub.s32 %v729, %v771
    %v773 = vrot.slane %v712, %v772
    %v774 = vlaneseq
    %v775 = vshrl.u32 %v774, 7
    %v776 = vsub.s32 %v729, %v775
    %v777 = vrot.slane %v715, %v776
    %v778 = vlaneseq
    %v779 = vshrl.u32 %v778, 7
    %v780 = vsub.s32 %v729, %v779
    %v781 = vrot.slane %v718, %v780
    %v782 = vlaneseq
    %v783 = vshrl.u32 %v782, 7
    %v784 = vsub.s32 %v729, %v783
    %v785 = vrot.slane %v721, %v784
    %v786 = vlaneseq
    %v787 = vshrl.u32 %v786, 7
    %v788 = vsub.s32 %v729, %v787
    %v789 = vrot.slane %v724, %v788
    %v790 = vlaneseq
    %v791 = vshrl.u32 %v790, 7
    %v792 = vsub.s32 %v729, %v791
    %v793 = vrot.slane %v727, %v792
    %vm794 = vcmask 1041409
    %v795 = vsel %vm794, %v737, %v733
    %v796 = vsel %vm794, %v745, %v741
    %v797 = vsel %vm794, %v753, %v749
    %v798 = vsel %vm794, %v761, %v757
    %v799 = vsel %vm794, %v769, %v765
    %v800 = vsel %vm794, %v777, %v773
    %v801 = vsel %vm794, %v785, %v781
    %v802 = vsel %vm794, %v793, %v789
    %vm811 = vcmask 41984
    %v812 = vsel %vm811, %v795, -inf
    %813 = vmax.xlane.f32.xlu0 %v812
    %v814 = vpop.xlane.xlu0 %813
    %v815 = vsel %vm811, %v796, -inf
    %816 = vmax.xlane.f32.xlu0 %v815
    %v817 = vpop.xlane.xlu0 %816
    %v818 = vsel %vm811, %v797, -inf
    %819 = vmax.xlane.f32.xlu0 %v818
    %v820 = vpop.xlane.xlu0 %819
    %v821 = vsel %vm811, %v798, -inf
    %822 = vmax.xlane.f32.xlu0 %v821
    %v823 = vpop.xlane.xlu0 %822
    %v824 = vsel %vm811, %v799, -inf
    %825 = vmax.xlane.f32.xlu0 %v824
    %v826 = vpop.xlane.xlu0 %825
    %v827 = vsel %vm811, %v800, -inf
    %828 = vmax.xlane.f32.xlu0 %v827
    %v829 = vpop.xlane.xlu0 %828
    %v830 = vsel %vm811, %v801, -inf
    %831 = vmax.xlane.f32.xlu0 %v830
    %v832 = vpop.xlane.xlu0 %831
    %v833 = vsel %vm811, %v802, -inf
    %834 = vmax.xlane.f32.xlu0 %v833
    %v835 = vpop.xlane.xlu0 %834
    %v844 = vlaneseq
    %v845 = vshrl.u32 %v844, 7
    %v846 = vsub.s32 0, %v845
    %v847 = vrot.slane %v814, %v846
    %v848 = vlaneseq
    %v849 = vshrl.u32 %v848, 7
    %v850 = vsub.s32 1, %v849
    %v851 = vrot.slane %v814, %v850
    %v852 = vlaneseq
    %v853 = vshrl.u32 %v852, 7
    %v854 = vsub.s32 0, %v853
    %v855 = vrot.slane %v817, %v854
    %v856 = vlaneseq
    %v857 = vshrl.u32 %v856, 7
    %v858 = vsub.s32 1, %v857
    %v859 = vrot.slane %v817, %v858
    %v860 = vlaneseq
    %v861 = vshrl.u32 %v860, 7
    %v862 = vsub.s32 0, %v861
    %v863 = vrot.slane %v820, %v862
    %v864 = vlaneseq
    %v865 = vshrl.u32 %v864, 7
    %v866 = vsub.s32 1, %v865
    %v867 = vrot.slane %v820, %v866
    %v868 = vlaneseq
    %v869 = vshrl.u32 %v868, 7
    %v870 = vsub.s32 0, %v869
    %v871 = vrot.slane %v823, %v870
    %v872 = vlaneseq
    %v873 = vshrl.u32 %v872, 7
    %v874 = vsub.s32 1, %v873
    %v875 = vrot.slane %v823, %v874
    %v876 = vlaneseq
    %v877 = vshrl.u32 %v876, 7
    %v878 = vsub.s32 0, %v877
    %v879 = vrot.slane %v826, %v878
    %v880 = vlaneseq
    %v881 = vshrl.u32 %v880, 7
    %v882 = vsub.s32 1, %v881
    %v883 = vrot.slane %v826, %v882
    %v884 = vlaneseq
    %v885 = vshrl.u32 %v884, 7
    %v886 = vsub.s32 0, %v885
    %v887 = vrot.slane %v829, %v886
    %v888 = vlaneseq
    %v889 = vshrl.u32 %v888, 7
    %v890 = vsub.s32 1, %v889
    %v891 = vrot.slane %v829, %v890
    %v892 = vlaneseq
    %v893 = vshrl.u32 %v892, 7
    %v894 = vsub.s32 0, %v893
    %v895 = vrot.slane %v832, %v894
    %v896 = vlaneseq
    %v897 = vshrl.u32 %v896, 7
    %v898 = vsub.s32 1, %v897
    %v899 = vrot.slane %v832, %v898
    %v900 = vlaneseq
    %v901 = vshrl.u32 %v900, 7
    %v902 = vsub.s32 0, %v901
    %v903 = vrot.slane %v835, %v902
    %v904 = vlaneseq
    %v905 = vshrl.u32 %v904, 7
    %v906 = vsub.s32 1, %v905
    %v907 = vrot.slane %v835, %v906
    %v924 = vsub.f32 %v648, %v847
    %v925 = vsub.f32 %v649, %v851
    %v926 = vsub.f32 %v650, %v855
    %v927 = vsub.f32 %v651, %v859
    %v928 = vsub.f32 %v652, %v863
    %v929 = vsub.f32 %v653, %v867
    %v930 = vsub.f32 %v654, %v871
    %v931 = vsub.f32 %v655, %v875
    %v932 = vsub.f32 %v656, %v879
    %v933 = vsub.f32 %v657, %v883
    %v934 = vsub.f32 %v658, %v887
    %v935 = vsub.f32 %v659, %v891
    %v936 = vsub.f32 %v660, %v895
    %v937 = vsub.f32 %v661, %v899
    %v938 = vsub.f32 %v662, %v903
    %v939 = vsub.f32 %v663, %v907
    %v940 = vmul.f32 %v924, 1.442695
    %v941 = vpow.pop %v940
    %v942 = vmul.f32 %v925, 1.442695
    %v943 = vpow.pop %v942
    %v944 = vmul.f32 %v926, 1.442695
    %v945 = vpow.pop %v944
    %v946 = vmul.f32 %v927, 1.442695
    %v947 = vpow.pop %v946
    %v948 = vmul.f32 %v928, 1.442695
    %v949 = vpow.pop %v948
    %v950 = vmul.f32 %v929, 1.442695
    %v951 = vpow.pop %v950
    %v952 = vmul.f32 %v930, 1.442695
    %v953 = vpow.pop %v952
    %v954 = vmul.f32 %v931, 1.442695
    %v955 = vpow.pop %v954
    %v956 = vmul.f32 %v932, 1.442695
    %v957 = vpow.pop %v956
    %v958 = vmul.f32 %v933, 1.442695
    %v959 = vpow.pop %v958
    %v960 = vmul.f32 %v934, 1.442695
    %v961 = vpow.pop %v960
    %v962 = vmul.f32 %v935, 1.442695
    %v963 = vpow.pop %v962
    %v964 = vmul.f32 %v936, 1.442695
    %v965 = vpow.pop %v964
    %v966 = vmul.f32 %v937, 1.442695
    %v967 = vpow.pop %v966
    %v968 = vmul.f32 %v938, 1.442695
    %v969 = vpow.pop %v968
    %v970 = vmul.f32 %v939, 1.442695
    %v971 = vpow.pop %v970
    %988 = vset.pattern.permute.xlu0 0
    %989 = vperm.xlu0 %988, %v941
    %v990 = vpop.permute.xlu0 %989
    %991 = vset.pattern.permute.xlu0 0
    %992 = vperm.xlu0 %991, %v943
    %v993 = vpop.permute.xlu0 %992
    %994 = vset.pattern.permute.xlu0 0
    %995 = vperm.xlu0 %994, %v945
    %v996 = vpop.permute.xlu0 %995
    %997 = vset.pattern.permute.xlu0 0
    %998 = vperm.xlu0 %997, %v947
    %v999 = vpop.permute.xlu0 %998
    %1000 = vset.pattern.permute.xlu0 0
    %1001 = vperm.xlu0 %1000, %v949
    %v1002 = vpop.permute.xlu0 %1001
    %1003 = vset.pattern.permute.xlu0 0
    %1004 = vperm.xlu0 %1003, %v951
    %v1005 = vpop.permute.xlu0 %1004
    %1006 = vset.pattern.permute.xlu0 0
    %1007 = vperm.xlu0 %1006, %v953
    %v1008 = vpop.permute.xlu0 %1007
    %1009 = vset.pattern.permute.xlu0 0
    %1010 = vperm.xlu0 %1009, %v955
    %v1011 = vpop.permute.xlu0 %1010
    %1012 = vset.pattern.permute.xlu0 0
    %1013 = vperm.xlu0 %1012, %v957
    %v1014 = vpop.permute.xlu0 %1013
    %1015 = vset.pattern.permute.xlu0 0
    %1016 = vperm.xlu0 %1015, %v959
    %v1017 = vpop.permute.xlu0 %1016
    %1018 = vset.pattern.permute.xlu0 0
    %1019 = vperm.xlu0 %1018, %v961
    %v1020 = vpop.permute.xlu0 %1019
    %1021 = vset.pattern.permute.xlu0 0
    %1022 = vperm.xlu0 %1021, %v963
    %v1023 = vpop.permute.xlu0 %1022
    %1024 = vset.pattern.permute.xlu0 0
    %1025 = vperm.xlu0 %1024, %v965
    %v1026 = vpop.permute.xlu0 %1025
    %1027 = vset.pattern.permute.xlu0 0
    %1028 = vperm.xlu0 %1027, %v967
    %v1029 = vpop.permute.xlu0 %1028
    %1030 = vset.pattern.permute.xlu0 0
    %1031 = vperm.xlu0 %1030, %v969
    %v1032 = vpop.permute.xlu0 %1031
    %1033 = vset.pattern.permute.xlu0 0
    %1034 = vperm.xlu0 %1033, %v971
    %v1035 = vpop.permute.xlu0 %1034
    %v1036 = vlaneseq
    %v1037 = vshrl.u32 %v1036, 7
    %v1038 = vsub.s32 %v729, %v1037
    %v1039 = vrot.slane %v990, %v1038
    %v1040 = vlaneseq
    %v1041 = vshrl.u32 %v1040, 7
    %v1042 = vsub.s32 %v729, %v1041
    %v1043 = vrot.slane %v993, %v1042
    %v1044 = vlaneseq
    %v1045 = vshrl.u32 %v1044, 7
    %v1046 = vsub.s32 %v729, %v1045
    %v1047 = vrot.slane %v996, %v1046
    %v1048 = vlaneseq
    %v1049 = vshrl.u32 %v1048, 7
    %v1050 = vsub.s32 %v729, %v1049
    %v1051 = vrot.slane %v999, %v1050
    %v1052 = vlaneseq
    %v1053 = vshrl.u32 %v1052, 7
    %v1054 = vsub.s32 %v729, %v1053
    %v1055 = vrot.slane %v1002, %v1054
    %v1056 = vlaneseq
    %v1057 = vshrl.u32 %v1056, 7
    %v1058 = vsub.s32 %v729, %v1057
    %v1059 = vrot.slane %v1005, %v1058
    %v1060 = vlaneseq
    %v1061 = vshrl.u32 %v1060, 7
    %v1062 = vsub.s32 %v729, %v1061
    %v1063 = vrot.slane %v1008, %v1062
    %v1064 = vlaneseq
    %v1065 = vshrl.u32 %v1064, 7
    %v1066 = vsub.s32 %v729, %v1065
    %v1067 = vrot.slane %v1011, %v1066
    %v1068 = vlaneseq
    %v1069 = vshrl.u32 %v1068, 7
    %v1070 = vsub.s32 %v729, %v1069
    %v1071 = vrot.slane %v1014, %v1070
    %v1072 = vlaneseq
    %v1073 = vshrl.u32 %v1072, 7
    %v1074 = vsub.s32 %v729, %v1073
    %v1075 = vrot.slane %v1017, %v1074
    %v1076 = vlaneseq
    %v1077 = vshrl.u32 %v1076, 7
    %v1078 = vsub.s32 %v729, %v1077
    %v1079 = vrot.slane %v1020, %v1078
    %v1080 = vlaneseq
    %v1081 = vshrl.u32 %v1080, 7
    %v1082 = vsub.s32 %v729, %v1081
    %v1083 = vrot.slane %v1023, %v1082
    %v1084 = vlaneseq
    %v1085 = vshrl.u32 %v1084, 7
    %v1086 = vsub.s32 %v729, %v1085
    %v1087 = vrot.slane %v1026, %v1086
    %v1088 = vlaneseq
    %v1089 = vshrl.u32 %v1088, 7
    %v1090 = vsub.s32 %v729, %v1089
    %v1091 = vrot.slane %v1029, %v1090
    %v1092 = vlaneseq
    %v1093 = vshrl.u32 %v1092, 7
    %v1094 = vsub.s32 %v729, %v1093
    %v1095 = vrot.slane %v1032, %v1094
    %v1096 = vlaneseq
    %v1097 = vshrl.u32 %v1096, 7
    %v1098 = vsub.s32 %v729, %v1097
    %v1099 = vrot.slane %v1035, %v1098
    %v1100 = vsel %vm794, %v1043, %v1039
    %v1101 = vsel %vm794, %v1051, %v1047
    %v1102 = vsel %vm794, %v1059, %v1055
    %v1103 = vsel %vm794, %v1067, %v1063
    %v1104 = vsel %vm794, %v1075, %v1071
    %v1105 = vsel %vm794, %v1083, %v1079
    %v1106 = vsel %vm794, %v1091, %v1087
    %v1107 = vsel %vm794, %v1099, %v1095
    %v1116 = vsel %vm811, %v1100, 0.0
    %1117 = vadd.xlane.f32.xlu0 %v1116
    %v1118 = vpop.xlane.xlu0 %1117
    %v1119 = vsel %vm811, %v1101, 0.0
    %1120 = vadd.xlane.f32.xlu0 %v1119
    %v1121 = vpop.xlane.xlu0 %1120
    %v1122 = vsel %vm811, %v1102, 0.0
    %1123 = vadd.xlane.f32.xlu0 %v1122
    %v1124 = vpop.xlane.xlu0 %1123
    %v1125 = vsel %vm811, %v1103, 0.0
    %1126 = vadd.xlane.f32.xlu0 %v1125
    %v1127 = vpop.xlane.xlu0 %1126
    %v1128 = vsel %vm811, %v1104, 0.0
    %1129 = vadd.xlane.f32.xlu0 %v1128
    %v1130 = vpop.xlane.xlu0 %1129
    %v1131 = vsel %vm811, %v1105, 0.0
    %1132 = vadd.xlane.f32.xlu0 %v1131
    %v1133 = vpop.xlane.xlu0 %1132
    %v1134 = vsel %vm811, %v1106, 0.0
    %1135 = vadd.xlane.f32.xlu0 %v1134
    %v1136 = vpop.xlane.xlu0 %1135
    %v1137 = vsel %vm811, %v1107, 0.0
    %1138 = vadd.xlane.f32.xlu0 %v1137
    %v1139 = vpop.xlane.xlu0 %1138
    %v1140 = vrcp.pop %v1118
    %v1141 = vrcp.pop %v1121
    %v1142 = vrcp.pop %v1124
    %v1143 = vrcp.pop %v1127
    %v1144 = vrcp.pop %v1130
    %v1145 = vrcp.pop %v1133
    %v1146 = vrcp.pop %v1136
    %v1147 = vrcp.pop %v1139
    %v1156 = vlaneseq
    %v1157 = vshrl.u32 %v1156, 7
    %v1158 = vsub.s32 0, %v1157
    %v1159 = vrot.slane %v1140, %v1158
    %v1160 = vlaneseq
    %v1161 = vshrl.u32 %v1160, 7
    %v1162 = vsub.s32 1, %v1161
    %v1163 = vrot.slane %v1140, %v1162
    %v1164 = vlaneseq
    %v1165 = vshrl.u32 %v1164, 7
    %v1166 = vsub.s32 0, %v1165
    %v1167 = vrot.slane %v1141, %v1166
    %v1168 = vlaneseq
    %v1169 = vshrl.u32 %v1168, 7
    %v1170 = vsub.s32 1, %v1169
    %v1171 = vrot.slane %v1141, %v1170
    %v1172 = vlaneseq
    %v1173 = vshrl.u32 %v1172, 7
    %v1174 = vsub.s32 0, %v1173
    %v1175 = vrot.slane %v1142, %v1174
    %v1176 = vlaneseq
    %v1177 = vshrl.u32 %v1176, 7
    %v1178 = vsub.s32 1, %v1177
    %v1179 = vrot.slane %v1142, %v1178
    %v1180 = vlaneseq
    %v1181 = vshrl.u32 %v1180, 7
    %v1182 = vsub.s32 0, %v1181
    %v1183 = vrot.slane %v1143, %v1182
    %v1184 = vlaneseq
    %v1185 = vshrl.u32 %v1184, 7
    %v1186 = vsub.s32 1, %v1185
    %v1187 = vrot.slane %v1143, %v1186
    %v1188 = vlaneseq
    %v1189 = vshrl.u32 %v1188, 7
    %v1190 = vsub.s32 0, %v1189
    %v1191 = vrot.slane %v1144, %v1190
    %v1192 = vlaneseq
    %v1193 = vshrl.u32 %v1192, 7
    %v1194 = vsub.s32 1, %v1193
    %v1195 = vrot.slane %v1144, %v1194
    %v1196 = vlaneseq
    %v1197 = vshrl.u32 %v1196, 7
    %v1198 = vsub.s32 0, %v1197
    %v1199 = vrot.slane %v1145, %v1198
    %v1200 = vlaneseq
    %v1201 = vshrl.u32 %v1200, 7
    %v1202 = vsub.s32 1, %v1201
    %v1203 = vrot.slane %v1145, %v1202
    %v1204 = vlaneseq
    %v1205 = vshrl.u32 %v1204, 7
    %v1206 = vsub.s32 0, %v1205
    %v1207 = vrot.slane %v1146, %v1206
    %v1208 = vlaneseq
    %v1209 = vshrl.u32 %v1208, 7
    %v1210 = vsub.s32 1, %v1209
    %v1211 = vrot.slane %v1146, %v1210
    %v1212 = vlaneseq
    %v1213 = vshrl.u32 %v1212, 7
    %v1214 = vsub.s32 0, %v1213
    %v1215 = vrot.slane %v1147, %v1214
    %v1216 = vlaneseq
    %v1217 = vshrl.u32 %v1216, 7
    %v1218 = vsub.s32 1, %v1217
    %v1219 = vrot.slane %v1147, %v1218
    %v1236 = vmul.f32 %v941, %v1159
    %v1237 = vmul.f32 %v943, %v1163
    %v1238 = vmul.f32 %v945, %v1167
    %v1239 = vmul.f32 %v947, %v1171
    %v1240 = vmul.f32 %v949, %v1175
    %v1241 = vmul.f32 %v951, %v1179
    %v1242 = vmul.f32 %v953, %v1183
    %v1243 = vmul.f32 %v955, %v1187
    %v1244 = vmul.f32 %v957, %v1191
    %v1245 = vmul.f32 %v959, %v1195
    %v1246 = vmul.f32 %v961, %v1199
    %v1247 = vmul.f32 %v963, %v1203
    %v1248 = vmul.f32 %v965, %v1207
    %v1249 = vmul.f32 %v967, %v1211
    %v1250 = vmul.f32 %v969, %v1215
    %v1251 = vmul.f32 %v971, %v1219
    %1253 = vset.pattern.permute.xlu0 22
    %1254 = vperm.xlu0 %1253, %v268
    %v1255 = vpop.permute.xlu0 %1254
    %1258 = vset.pattern.permute.xlu0 22
    %1259 = vperm.xlu0 %1258, %v269
    %v1260 = vpop.permute.xlu0 %1259
    %v1262 = vmul.f32 %v1255, %v204
    %v1263 = vmul.f32 %v1260, %v205
    %v1266 = vcombine.high %v1262, %v1262
    %v1268 = vunpack.c.l.s4 1983009808
    %v1269 = vunpack.c.0.s8 %v1268
    %v1270 = vlaneseq
    %v1271 = vshrl.u32 %v1270, 7
    %v1272 = vsub.s32 %v1269, %v1271
    %v1273 = vrot.slane %v1262, %v1272
    %v1275 = vunpack.c.l.s4 1983009808
    %v1276 = vunpack.c.0.s8 %v1275
    %v1277 = vlaneseq
    %v1278 = vshrl.u32 %v1277, 7
    %v1279 = vsub.s32 %v1276, %v1278
    %v1280 = vrot.slane %v1266, %v1279
    %v1281 = vcombine.high %v1273, %v1273
    %v1282 = vcombine.high %v1280, %v1280
    %v1283 = vcombine.high %v1263, %v1263
    %v1285 = vunpack.c.l.s4 1983009808
    %v1286 = vunpack.c.0.s8 %v1285
    %v1287 = vlaneseq
    %v1288 = vshrl.u32 %v1287, 7
    %v1289 = vsub.s32 %v1286, %v1288
    %v1290 = vrot.slane %v1263, %v1289
    %v1292 = vunpack.c.l.s4 1983009808
    %v1293 = vunpack.c.0.s8 %v1292
    %v1294 = vlaneseq
    %v1295 = vshrl.u32 %v1294, 7
    %v1296 = vsub.s32 %v1293, %v1295
    %v1297 = vrot.slane %v1283, %v1296
    %v1298 = vcombine.high %v1290, %v1290
    %v1299 = vcombine.high %v1297, %v1297
    %vm1308 = vcmask 74752
    %1309 = vst.msk [vmem:[#allocation5] sm:$0x3] %vm1308, %v1273
    %1310 = vst.msk [vmem:[#allocation5 + $0x2] sm:$0x3] %vm1308, %v1281
    %1311 = vst.msk [vmem:[#allocation5 + $0x4] sm:$0x3] %vm1308, %v1280
    %1312 = vst.msk [vmem:[#allocation5 + $0x6] sm:$0x3] %vm1308, %v1282
    %1313 = vst.msk [vmem:[#allocation5 + $0x8] sm:$0x3] %vm1308, %v1290
    %1314 = vst.msk [vmem:[#allocation5 + $0xa] sm:$0x3] %vm1308, %v1298
    %1315 = vst.msk [vmem:[#allocation5 + $0xc] sm:$0x3] %vm1308, %v1297
    %1316 = vst.msk [vmem:[#allocation5 + $0xe] sm:$0x3] %vm1308, %v1299
    %1317 = vset.pattern.permute.xlu0 23
    %1318 = vperm.xlu0 %1317, %v268
    %v1319 = vpop.permute.xlu0 %1318
    %1321 = vset.pattern.permute.xlu0 23
    %1322 = vperm.xlu0 %1321, %v269
    %v1323 = vpop.permute.xlu0 %1322
    %v1325 = vmul.f32 %v1319, %v236
    %v1326 = vmul.f32 %v1323, %v237
    %v1329 = vcombine.high %v1325, %v1325
    %v1331 = vunpack.c.l.s4 1983009808
    %v1332 = vunpack.c.0.s8 %v1331
    %v1333 = vlaneseq
    %v1334 = vshrl.u32 %v1333, 7
    %v1335 = vsub.s32 %v1332, %v1334
    %v1336 = vrot.slane %v1325, %v1335
    %v1338 = vunpack.c.l.s4 1983009808
    %v1339 = vunpack.c.0.s8 %v1338
    %v1340 = vlaneseq
    %v1341 = vshrl.u32 %v1340, 7
    %v1342 = vsub.s32 %v1339, %v1341
    %v1343 = vrot.slane %v1329, %v1342
    %v1344 = vcombine.high %v1336, %v1336
    %v1345 = vcombine.high %v1343, %v1343
    %v1346 = vcombine.high %v1326, %v1326
    %v1348 = vunpack.c.l.s4 1983009808
    %v1349 = vunpack.c.0.s8 %v1348
    %v1350 = vlaneseq
    %v1351 = vshrl.u32 %v1350, 7
    %v1352 = vsub.s32 %v1349, %v1351
    %v1353 = vrot.slane %v1326, %v1352
    %v1355 = vunpack.c.l.s4 1983009808
    %v1356 = vunpack.c.0.s8 %v1355
    %v1357 = vlaneseq
    %v1358 = vshrl.u32 %v1357, 7
    %v1359 = vsub.s32 %v1356, %v1358
    %v1360 = vrot.slane %v1346, %v1359
    %v1361 = vcombine.high %v1353, %v1353
    %v1362 = vcombine.high %v1360, %v1360
    %v1364 = vunpack.c.l.s4 1983009808
    %v1365 = vunpack.c.0.s8 %v1364
    %v1366 = vlaneseq
    %v1367 = vshrl.u32 %v1366, 7
    %v1368 = vsub.s32 %v1365, %v1367
    %v1369 = vrot.slane %v1336, %v1368
    %v1371 = vunpack.c.l.s4 1983009808
    %v1372 = vunpack.c.0.s8 %v1371
    %v1373 = vlaneseq
    %v1374 = vshrl.u32 %v1373, 7
    %v1375 = vsub.s32 %v1372, %v1374
    %v1376 = vrot.slane %v1344, %v1375
    %v1378 = vunpack.c.l.s4 1983009808
    %v1379 = vunpack.c.0.s8 %v1378
    %v1380 = vlaneseq
    %v1381 = vshrl.u32 %v1380, 7
    %v1382 = vsub.s32 %v1379, %v1381
    %v1383 = vrot.slane %v1343, %v1382
    %v1385 = vunpack.c.l.s4 1983009808
    %v1386 = vunpack.c.0.s8 %v1385
    %v1387 = vlaneseq
    %v1388 = vshrl.u32 %v1387, 7
    %v1389 = vsub.s32 %v1386, %v1388
    %v1390 = vrot.slane %v1345, %v1389
    %v1392 = vunpack.c.l.s4 1983009808
    %v1393 = vunpack.c.0.s8 %v1392
    %v1394 = vlaneseq
    %v1395 = vshrl.u32 %v1394, 7
    %v1396 = vsub.s32 %v1393, %v1395
    %v1397 = vrot.slane %v1353, %v1396
    %v1399 = vunpack.c.l.s4 1983009808
    %v1400 = vunpack.c.0.s8 %v1399
    %v1401 = vlaneseq
    %v1402 = vshrl.u32 %v1401, 7
    %v1403 = vsub.s32 %v1400, %v1402
    %v1404 = vrot.slane %v1361, %v1403
    %v1406 = vunpack.c.l.s4 1983009808
    %v1407 = vunpack.c.0.s8 %v1406
    %v1408 = vlaneseq
    %v1409 = vshrl.u32 %v1408, 7
    %v1410 = vsub.s32 %v1407, %v1409
    %v1411 = vrot.slane %v1360, %v1410
    %v1413 = vunpack.c.l.s4 1983009808
    %v1414 = vunpack.c.0.s8 %v1413
    %v1415 = vlaneseq
    %v1416 = vshrl.u32 %v1415, 7
    %v1417 = vsub.s32 %v1414, %v1416
    %v1418 = vrot.slane %v1362, %v1417
    %1419 = vrot.lane.b32.xlu0 %v1369, 118
    %v1420 = vpop.permute.xlu0 %1419
    %1421 = vrot.lane.b32.xlu0 %v1376, 118
    %v1422 = vpop.permute.xlu0 %1421
    %1423 = vrot.lane.b32.xlu0 %v1383, 118
    %v1424 = vpop.permute.xlu0 %1423
    %1425 = vrot.lane.b32.xlu0 %v1390, 118
    %v1426 = vpop.permute.xlu0 %1425
    %1427 = vrot.lane.b32.xlu0 %v1397, 118
    %v1428 = vpop.permute.xlu0 %1427
    %1429 = vrot.lane.b32.xlu0 %v1404, 118
    %v1430 = vpop.permute.xlu0 %1429
    %1431 = vrot.lane.b32.xlu0 %v1411, 118
    %v1432 = vpop.permute.xlu0 %1431
    %1433 = vrot.lane.b32.xlu0 %v1418, 118
    %v1434 = vpop.permute.xlu0 %1433
    %vm1443 = vcmask 91136
    %1444 = vst.msk [vmem:[#allocation6] sm:$0x3] %vm1443, %v1420
    %1445 = vst.msk [vmem:[#allocation6 + $0x2] sm:$0x3] %vm1443, %v1422
    %1446 = vst.msk [vmem:[#allocation6 + $0x4] sm:$0x3] %vm1443, %v1424
    %1447 = vst.msk [vmem:[#allocation6 + $0x6] sm:$0x3] %vm1443, %v1426
    %1448 = vst.msk [vmem:[#allocation6 + $0x8] sm:$0x3] %vm1443, %v1428
    %1449 = vst.msk [vmem:[#allocation6 + $0xa] sm:$0x3] %vm1443, %v1430
    %1450 = vst.msk [vmem:[#allocation6 + $0xc] sm:$0x3] %vm1443, %v1432
    %1451 = vst.msk [vmem:[#allocation6 + $0xe] sm:$0x3] %vm1443, %v1434
    %v1452 = vcombine.high %v268, %v268
    %v1454 = vunpack.c.l.s4 1983009808
    %v1455 = vunpack.c.0.s8 %v1454
    %v1456 = vlaneseq
    %v1457 = vshrl.u32 %v1456, 7
    %v1458 = vsub.s32 %v1455, %v1457
    %v1459 = vrot.slane %v268, %v1458
    %v1461 = vunpack.c.l.s4 1983009808
    %v1462 = vunpack.c.0.s8 %v1461
    %v1463 = vlaneseq
    %v1464 = vshrl.u32 %v1463, 7
    %v1465 = vsub.s32 %v1462, %v1464
    %v1466 = vrot.slane %v1452, %v1465
    %v1467 = vcombine.high %v1459, %v1459
    %v1468 = vcombine.high %v1466, %v1466
    %v1469 = vcombine.high %v269, %v269
    %v1471 = vunpack.c.l.s4 1983009808
    %v1472 = vunpack.c.0.s8 %v1471
    %v1473 = vlaneseq
    %v1474 = vshrl.u32 %v1473, 7
    %v1475 = vsub.s32 %v1472, %v1474
    %v1476 = vrot.slane %v269, %v1475
    %v1478 = vunpack.c.l.s4 1983009808
    %v1479 = vunpack.c.0.s8 %v1478
    %v1480 = vlaneseq
    %v1481 = vshrl.u32 %v1480, 7
    %v1482 = vsub.s32 %v1479, %v1481
    %v1483 = vrot.slane %v1469, %v1482
    %v1484 = vcombine.high %v1476, %v1476
    %v1485 = vcombine.high %v1483, %v1483
    %1486 = vset.pattern.permute.xlu0 24
    %1487 = vperm.xlu0 %1486, %v1459
    %v1488 = vpop.permute.xlu0 %1487
    %v1491 = vunpack.c.l.s4 269488144
    %v1492 = vunpack.c.0.s8 %v1491
    %v1493 = vlaneseq
    %v1494 = vshrl.u32 %v1493, 7
    %v1495 = vsub.s32 %v1492, %v1494
    %v1496 = vrot.slane %v1488, %v1495
    %1497 = vset.pattern.permute.xlu0 24
    %1498 = vperm.xlu0 %1497, %v1467
    %v1499 = vpop.permute.xlu0 %1498
    %v1502 = vunpack.c.l.s4 269488144
    %v1503 = vunpack.c.0.s8 %v1502
    %v1504 = vlaneseq
    %v1505 = vshrl.u32 %v1504, 7
    %v1506 = vsub.s32 %v1503, %v1505
    %v1507 = vrot.slane %v1499, %v1506
    %1508 = vset.pattern.permute.xlu0 24
    %1509 = vperm.xlu0 %1508, %v1466
    %v1510 = vpop.permute.xlu0 %1509
    %v1513 = vunpack.c.l.s4 269488144
    %v1514 = vunpack.c.0.s8 %v1513
    %v1515 = vlaneseq
    %v1516 = vshrl.u32 %v1515, 7
    %v1517 = vsub.s32 %v1514, %v1516
    %v1518 = vrot.slane %v1510, %v1517
    %1519 = vset.pattern.permute.xlu0 24
    %1520 = vperm.xlu0 %1519, %v1468
    %v1521 = vpop.permute.xlu0 %1520
    %v1524 = vunpack.c.l.s4 269488144
    %v1525 = vunpack.c.0.s8 %v1524
    %v1526 = vlaneseq
    %v1527 = vshrl.u32 %v1526, 7
    %v1528 = vsub.s32 %v1525, %v1527
    %v1529 = vrot.slane %v1521, %v1528
    %1530 = vset.pattern.permute.xlu0 24
    %1531 = vperm.xlu0 %1530, %v1476
    %v1532 = vpop.permute.xlu0 %1531
    %v1535 = vunpack.c.l.s4 269488144
    %v1536 = vunpack.c.0.s8 %v1535
    %v1537 = vlaneseq
    %v1538 = vshrl.u32 %v1537, 7
    %v1539 = vsub.s32 %v1536, %v1538
    %v1540 = vrot.slane %v1532, %v1539
    %1541 = vset.pattern.permute.xlu0 24
    %1542 = vperm.xlu0 %1541, %v1484
    %v1543 = vpop.permute.xlu0 %1542
    %v1546 = vunpack.c.l.s4 269488144
    %v1547 = vunpack.c.0.s8 %v1546
    %v1548 = vlaneseq
    %v1549 = vshrl.u32 %v1548, 7
    %v1550 = vsub.s32 %v1547, %v1549
    %v1551 = vrot.slane %v1543, %v1550
    %1552 = vset.pattern.permute.xlu0 24
    %1553 = vperm.xlu0 %1552, %v1483
    %v1554 = vpop.permute.xlu0 %1553
    %v1557 = vunpack.c.l.s4 269488144
    %v1558 = vunpack.c.0.s8 %v1557
    %v1559 = vlaneseq
    %v1560 = vshrl.u32 %v1559, 7
    %v1561 = vsub.s32 %v1558, %v1560
    %v1562 = vrot.slane %v1554, %v1561
    %1563 = vset.pattern.permute.xlu0 24
    %1564 = vperm.xlu0 %1563, %v1485
    %v1565 = vpop.permute.xlu0 %1564
    %v1568 = vunpack.c.l.s4 269488144
    %v1569 = vunpack.c.0.s8 %v1568
    %v1570 = vlaneseq
    %v1571 = vshrl.u32 %v1570, 7
    %v1572 = vsub.s32 %v1569, %v1571
    %v1573 = vrot.slane %v1565, %v1572
    %v1590 = vcombine.high %v1236, %v1236
    %v1592 = vunpack.c.l.s4 1983009808
    %v1593 = vunpack.c.0.s8 %v1592
    %v1594 = vlaneseq
    %v1595 = vshrl.u32 %v1594, 7
    %v1596 = vsub.s32 %v1593, %v1595
    %v1597 = vrot.slane %v1236, %v1596
    %v1599 = vunpack.c.l.s4 1983009808
    %v1600 = vunpack.c.0.s8 %v1599
    %v1601 = vlaneseq
    %v1602 = vshrl.u32 %v1601, 7
    %v1603 = vsub.s32 %v1600, %v1602
    %v1604 = vrot.slane %v1590, %v1603
    %v1605 = vcombine.high %v1597, %v1597
    %v1606 = vcombine.high %v1237, %v1237
    %v1608 = vunpack.c.l.s4 1983009808
    %v1609 = vunpack.c.0.s8 %v1608
    %v1610 = vlaneseq
    %v1611 = vshrl.u32 %v1610, 7
    %v1612 = vsub.s32 %v1609, %v1611
    %v1613 = vrot.slane %v1237, %v1612
    %v1615 = vunpack.c.l.s4 1983009808
    %v1616 = vunpack.c.0.s8 %v1615
    %v1617 = vlaneseq
    %v1618 = vshrl.u32 %v1617, 7
    %v1619 = vsub.s32 %v1616, %v1618
    %v1620 = vrot.slane %v1606, %v1619
    %v1621 = vcombine.high %v1613, %v1613
    %v1622 = vcombine.high %v1238, %v1238
    %v1624 = vunpack.c.l.s4 1983009808
    %v1625 = vunpack.c.0.s8 %v1624
    %v1626 = vlaneseq
    %v1627 = vshrl.u32 %v1626, 7
    %v1628 = vsub.s32 %v1625, %v1627
    %v1629 = vrot.slane %v1238, %v1628
    %v1631 = vunpack.c.l.s4 1983009808
    %v1632 = vunpack.c.0.s8 %v1631
    %v1633 = vlaneseq
    %v1634 = vshrl.u32 %v1633, 7
    %v1635 = vsub.s32 %v1632, %v1634
    %v1636 = vrot.slane %v1622, %v1635
    %v1637 = vcombine.high %v1629, %v1629
    %v1638 = vcombine.high %v1239, %v1239
    %v1640 = vunpack.c.l.s4 1983009808
    %v1641 = vunpack.c.0.s8 %v1640
    %v1642 = vlaneseq
    %v1643 = vshrl.u32 %v1642, 7
    %v1644 = vsub.s32 %v1641, %v1643
    %v1645 = vrot.slane %v1239, %v1644
    %v1647 = vunpack.c.l.s4 1983009808
    %v1648 = vunpack.c.0.s8 %v1647
    %v1649 = vlaneseq
    %v1650 = vshrl.u32 %v1649, 7
    %v1651 = vsub.s32 %v1648, %v1650
    %v1652 = vrot.slane %v1638, %v1651
    %v1653 = vcombine.high %v1645, %v1645
    %v1654 = vcombine.high %v1240, %v1240
    %v1656 = vunpack.c.l.s4 1983009808
    %v1657 = vunpack.c.0.s8 %v1656
    %v1658 = vlaneseq
    %v1659 = vshrl.u32 %v1658, 7
    %v1660 = vsub.s32 %v1657, %v1659
    %v1661 = vrot.slane %v1240, %v1660
    %v1663 = vunpack.c.l.s4 1983009808
    %v1664 = vunpack.c.0.s8 %v1663
    %v1665 = vlaneseq
    %v1666 = vshrl.u32 %v1665, 7
    %v1667 = vsub.s32 %v1664, %v1666
    %v1668 = vrot.slane %v1654, %v1667
    %v1669 = vcombine.high %v1661, %v1661
    %v1670 = vcombine.high %v1241, %v1241
    %v1672 = vunpack.c.l.s4 1983009808
    %v1673 = vunpack.c.0.s8 %v1672
    %v1674 = vlaneseq
    %v1675 = vshrl.u32 %v1674, 7
    %v1676 = vsub.s32 %v1673, %v1675
    %v1677 = vrot.slane %v1241, %v1676
    %v1679 = vunpack.c.l.s4 1983009808
    %v1680 = vunpack.c.0.s8 %v1679
    %v1681 = vlaneseq
    %v1682 = vshrl.u32 %v1681, 7
    %v1683 = vsub.s32 %v1680, %v1682
    %v1684 = vrot.slane %v1670, %v1683
    %v1685 = vcombine.high %v1677, %v1677
    %v1686 = vcombine.high %v1242, %v1242
    %v1688 = vunpack.c.l.s4 1983009808
    %v1689 = vunpack.c.0.s8 %v1688
    %v1690 = vlaneseq
    %v1691 = vshrl.u32 %v1690, 7
    %v1692 = vsub.s32 %v1689, %v1691
    %v1693 = vrot.slane %v1242, %v1692
    %v1695 = vunpack.c.l.s4 1983009808
    %v1696 = vunpack.c.0.s8 %v1695
    %v1697 = vlaneseq
    %v1698 = vshrl.u32 %v1697, 7
    %v1699 = vsub.s32 %v1696, %v1698
    %v1700 = vrot.slane %v1686, %v1699
    %v1701 = vcombine.high %v1693, %v1693
    %v1702 = vcombine.high %v1243, %v1243
    %v1704 = vunpack.c.l.s4 1983009808
    %v1705 = vunpack.c.0.s8 %v1704
    %v1706 = vlaneseq
    %v1707 = vshrl.u32 %v1706, 7
    %v1708 = vsub.s32 %v1705, %v1707
    %v1709 = vrot.slane %v1243, %v1708
    %v1711 = vunpack.c.l.s4 1983009808
    %v1712 = vunpack.c.0.s8 %v1711
    %v1713 = vlaneseq
    %v1714 = vshrl.u32 %v1713, 7
    %v1715 = vsub.s32 %v1712, %v1714
    %v1716 = vrot.slane %v1702, %v1715
    %v1717 = vcombine.high %v1709, %v1709
    %v1718 = vcombine.high %v1244, %v1244
    %v1720 = vunpack.c.l.s4 1983009808
    %v1721 = vunpack.c.0.s8 %v1720
    %v1722 = vlaneseq
    %v1723 = vshrl.u32 %v1722, 7
    %v1724 = vsub.s32 %v1721, %v1723
    %v1725 = vrot.slane %v1244, %v1724
    %v1727 = vunpack.c.l.s4 1983009808
    %v1728 = vunpack.c.0.s8 %v1727
    %v1729 = vlaneseq
    %v1730 = vshrl.u32 %v1729, 7
    %v1731 = vsub.s32 %v1728, %v1730
    %v1732 = vrot.slane %v1718, %v1731
    %v1733 = vcombine.high %v1725, %v1725
    %v1734 = vcombine.high %v1245, %v1245
    %v1736 = vunpack.c.l.s4 1983009808
    %v1737 = vunpack.c.0.s8 %v1736
    %v1738 = vlaneseq
    %v1739 = vshrl.u32 %v1738, 7
    %v1740 = vsub.s32 %v1737, %v1739
    %v1741 = vrot.slane %v1245, %v1740
    %v1743 = vunpack.c.l.s4 1983009808
    %v1744 = vunpack.c.0.s8 %v1743
    %v1745 = vlaneseq
    %v1746 = vshrl.u32 %v1745, 7
    %v1747 = vsub.s32 %v1744, %v1746
    %v1748 = vrot.slane %v1734, %v1747
    %v1749 = vcombine.high %v1741, %v1741
    %v1750 = vcombine.high %v1246, %v1246
    %v1752 = vunpack.c.l.s4 1983009808
    %v1753 = vunpack.c.0.s8 %v1752
    %v1754 = vlaneseq
    %v1755 = vshrl.u32 %v1754, 7
    %v1756 = vsub.s32 %v1753, %v1755
    %v1757 = vrot.slane %v1246, %v1756
    %v1759 = vunpack.c.l.s4 1983009808
    %v1760 = vunpack.c.0.s8 %v1759
    %v1761 = vlaneseq
    %v1762 = vshrl.u32 %v1761, 7
    %v1763 = vsub.s32 %v1760, %v1762
    %v1764 = vrot.slane %v1750, %v1763
    %v1765 = vcombine.high %v1757, %v1757
    %v1766 = vcombine.high %v1247, %v1247
    %v1768 = vunpack.c.l.s4 1983009808
    %v1769 = vunpack.c.0.s8 %v1768
    %v1770 = vlaneseq
    %v1771 = vshrl.u32 %v1770, 7
    %v1772 = vsub.s32 %v1769, %v1771
    %v1773 = vrot.slane %v1247, %v1772
    %v1775 = vunpack.c.l.s4 1983009808
    %v1776 = vunpack.c.0.s8 %v1775
    %v1777 = vlaneseq
    %v1778 = vshrl.u32 %v1777, 7
    %v1779 = vsub.s32 %v1776, %v1778
    %v1780 = vrot.slane %v1766, %v1779
    %v1781 = vcombine.high %v1773, %v1773
    %v1782 = vcombine.high %v1248, %v1248
    %v1784 = vunpack.c.l.s4 1983009808
    %v1785 = vunpack.c.0.s8 %v1784
    %v1786 = vlaneseq
    %v1787 = vshrl.u32 %v1786, 7
    %v1788 = vsub.s32 %v1785, %v1787
    %v1789 = vrot.slane %v1248, %v1788
    %v1791 = vunpack.c.l.s4 1983009808
    %v1792 = vunpack.c.0.s8 %v1791
    %v1793 = vlaneseq
    %v1794 = vshrl.u32 %v1793, 7
    %v1795 = vsub.s32 %v1792, %v1794
    %v1796 = vrot.slane %v1782, %v1795
    %v1797 = vcombine.high %v1789, %v1789
    %v1798 = vcombine.high %v1249, %v1249
    %v1800 = vunpack.c.l.s4 1983009808
    %v1801 = vunpack.c.0.s8 %v1800
    %v1802 = vlaneseq
    %v1803 = vshrl.u32 %v1802, 7
    %v1804 = vsub.s32 %v1801, %v1803
    %v1805 = vrot.slane %v1249, %v1804
    %v1807 = vunpack.c.l.s4 1983009808
    %v1808 = vunpack.c.0.s8 %v1807
    %v1809 = vlaneseq
    %v1810 = vshrl.u32 %v1809, 7
    %v1811 = vsub.s32 %v1808, %v1810
    %v1812 = vrot.slane %v1798, %v1811
    %v1813 = vcombine.high %v1805, %v1805
    %v1814 = vcombine.high %v1250, %v1250
    %v1816 = vunpack.c.l.s4 1983009808
    %v1817 = vunpack.c.0.s8 %v1816
    %v1818 = vlaneseq
    %v1819 = vshrl.u32 %v1818, 7
    %v1820 = vsub.s32 %v1817, %v1819
    %v1821 = vrot.slane %v1250, %v1820
    %v1823 = vunpack.c.l.s4 1983009808
    %v1824 = vunpack.c.0.s8 %v1823
    %v1825 = vlaneseq
    %v1826 = vshrl.u32 %v1825, 7
    %v1827 = vsub.s32 %v1824, %v1826
    %v1828 = vrot.slane %v1814, %v1827
    %v1829 = vcombine.high %v1821, %v1821
    %v1830 = vcombine.high %v1251, %v1251
    %v1832 = vunpack.c.l.s4 1983009808
    %v1833 = vunpack.c.0.s8 %v1832
    %v1834 = vlaneseq
    %v1835 = vshrl.u32 %v1834, 7
    %v1836 = vsub.s32 %v1833, %v1835
    %v1837 = vrot.slane %v1251, %v1836
    %v1839 = vunpack.c.l.s4 1983009808
    %v1840 = vunpack.c.0.s8 %v1839
    %v1841 = vlaneseq
    %v1842 = vshrl.u32 %v1841, 7
    %v1843 = vsub.s32 %v1840, %v1842
    %v1844 = vrot.slane %v1830, %v1843
    %v1845 = vcombine.high %v1837, %v1837
    %v1846 = vcombine.low %v1597, %v1605
    %v1848 = vunpack.c.l.s4 1983009808
    %v1849 = vunpack.c.0.s8 %v1848
    %v1850 = vlaneseq
    %v1851 = vshrl.u32 %v1850, 7
    %v1852 = vsub.s32 %v1849, %v1851
    %v1853 = vrot.slane %v1846, %v1852
    %v1855 = vunpack.c.l.s4 1983009808
    %v1856 = vunpack.c.0.s8 %v1855
    %v1857 = vlaneseq
    %v1858 = vshrl.u32 %v1857, 7
    %v1859 = vsub.s32 %v1856, %v1858
    %v1860 = vrot.slane %v1604, %v1859
    %v1861 = vcombine.low %v1853, %v1860
    %v1862 = vcombine.low %v1613, %v1621
    %v1864 = vunpack.c.l.s4 1983009808
    %v1865 = vunpack.c.0.s8 %v1864
    %v1866 = vlaneseq
    %v1867 = vshrl.u32 %v1866, 7
    %v1868 = vsub.s32 %v1865, %v1867
    %v1869 = vrot.slane %v1862, %v1868
    %v1871 = vunpack.c.l.s4 1983009808
    %v1872 = vunpack.c.0.s8 %v1871
    %v1873 = vlaneseq
    %v1874 = vshrl.u32 %v1873, 7
    %v1875 = vsub.s32 %v1872, %v1874
    %v1876 = vrot.slane %v1620, %v1875
    %v1877 = vcombine.low %v1869, %v1876
    %v1878 = vcombine.low %v1629, %v1637
    %v1880 = vunpack.c.l.s4 1983009808
    %v1881 = vunpack.c.0.s8 %v1880
    %v1882 = vlaneseq
    %v1883 = vshrl.u32 %v1882, 7
    %v1884 = vsub.s32 %v1881, %v1883
    %v1885 = vrot.slane %v1878, %v1884
    %v1887 = vunpack.c.l.s4 1983009808
    %v1888 = vunpack.c.0.s8 %v1887
    %v1889 = vlaneseq
    %v1890 = vshrl.u32 %v1889, 7
    %v1891 = vsub.s32 %v1888, %v1890
    %v1892 = vrot.slane %v1636, %v1891
    %v1893 = vcombine.low %v1885, %v1892
    %v1894 = vcombine.low %v1645, %v1653
    %v1896 = vunpack.c.l.s4 1983009808
    %v1897 = vunpack.c.0.s8 %v1896
    %v1898 = vlaneseq
    %v1899 = vshrl.u32 %v1898, 7
    %v1900 = vsub.s32 %v1897, %v1899
    %v1901 = vrot.slane %v1894, %v1900
    %v1903 = vunpack.c.l.s4 1983009808
    %v1904 = vunpack.c.0.s8 %v1903
    %v1905 = vlaneseq
    %v1906 = vshrl.u32 %v1905, 7
    %v1907 = vsub.s32 %v1904, %v1906
    %v1908 = vrot.slane %v1652, %v1907
    %v1909 = vcombine.low %v1901, %v1908
    %v1910 = vcombine.low %v1661, %v1669
    %v1912 = vunpack.c.l.s4 1983009808
    %v1913 = vunpack.c.0.s8 %v1912
    %v1914 = vlaneseq
    %v1915 = vshrl.u32 %v1914, 7
    %v1916 = vsub.s32 %v1913, %v1915
    %v1917 = vrot.slane %v1910, %v1916
    %v1919 = vunpack.c.l.s4 1983009808
    %v1920 = vunpack.c.0.s8 %v1919
    %v1921 = vlaneseq
    %v1922 = vshrl.u32 %v1921, 7
    %v1923 = vsub.s32 %v1920, %v1922
    %v1924 = vrot.slane %v1668, %v1923
    %v1925 = vcombine.low %v1917, %v1924
    %v1926 = vcombine.low %v1677, %v1685
    %v1928 = vunpack.c.l.s4 1983009808
    %v1929 = vunpack.c.0.s8 %v1928
    %v1930 = vlaneseq
    %v1931 = vshrl.u32 %v1930, 7
    %v1932 = vsub.s32 %v1929, %v1931
    %v1933 = vrot.slane %v1926, %v1932
    %v1935 = vunpack.c.l.s4 1983009808
    %v1936 = vunpack.c.0.s8 %v1935
    %v1937 = vlaneseq
    %v1938 = vshrl.u32 %v1937, 7
    %v1939 = vsub.s32 %v1936, %v1938
    %v1940 = vrot.slane %v1684, %v1939
    %v1941 = vcombine.low %v1933, %v1940
    %v1942 = vcombine.low %v1693, %v1701
    %v1944 = vunpack.c.l.s4 1983009808
    %v1945 = vunpack.c.0.s8 %v1944
    %v1946 = vlaneseq
    %v1947 = vshrl.u32 %v1946, 7
    %v1948 = vsub.s32 %v1945, %v1947
    %v1949 = vrot.slane %v1942, %v1948
    %v1951 = vunpack.c.l.s4 1983009808
    %v1952 = vunpack.c.0.s8 %v1951
    %v1953 = vlaneseq
    %v1954 = vshrl.u32 %v1953, 7
    %v1955 = vsub.s32 %v1952, %v1954
    %v1956 = vrot.slane %v1700, %v1955
    %v1957 = vcombine.low %v1949, %v1956
    %v1958 = vcombine.low %v1709, %v1717
    %v1960 = vunpack.c.l.s4 1983009808
    %v1961 = vunpack.c.0.s8 %v1960
    %v1962 = vlaneseq
    %v1963 = vshrl.u32 %v1962, 7
    %v1964 = vsub.s32 %v1961, %v1963
    %v1965 = vrot.slane %v1958, %v1964
    %v1967 = vunpack.c.l.s4 1983009808
    %v1968 = vunpack.c.0.s8 %v1967
    %v1969 = vlaneseq
    %v1970 = vshrl.u32 %v1969, 7
    %v1971 = vsub.s32 %v1968, %v1970
    %v1972 = vrot.slane %v1716, %v1971
    %v1973 = vcombine.low %v1965, %v1972
    %v1974 = vcombine.low %v1725, %v1733
    %v1976 = vunpack.c.l.s4 1983009808
    %v1977 = vunpack.c.0.s8 %v1976
    %v1978 = vlaneseq
    %v1979 = vshrl.u32 %v1978, 7
    %v1980 = vsub.s32 %v1977, %v1979
    %v1981 = vrot.slane %v1974, %v1980
    %v1983 = vunpack.c.l.s4 1983009808
    %v1984 = vunpack.c.0.s8 %v1983
    %v1985 = vlaneseq
    %v1986 = vshrl.u32 %v1985, 7
    %v1987 = vsub.s32 %v1984, %v1986
    %v1988 = vrot.slane %v1732, %v1987
    %v1989 = vcombine.low %v1981, %v1988
    %v1990 = vcombine.low %v1741, %v1749
    %v1992 = vunpack.c.l.s4 1983009808
    %v1993 = vunpack.c.0.s8 %v1992
    %v1994 = vlaneseq
    %v1995 = vshrl.u32 %v1994, 7
    %v1996 = vsub.s32 %v1993, %v1995
    %v1997 = vrot.slane %v1990, %v1996
    %v1999 = vunpack.c.l.s4 1983009808
    %v2000 = vunpack.c.0.s8 %v1999
    %v2001 = vlaneseq
    %v2002 = vshrl.u32 %v2001, 7
    %v2003 = vsub.s32 %v2000, %v2002
    %v2004 = vrot.slane %v1748, %v2003
    %v2005 = vcombine.low %v1997, %v2004
    %v2006 = vcombine.low %v1757, %v1765
    %v2008 = vunpack.c.l.s4 1983009808
    %v2009 = vunpack.c.0.s8 %v2008
    %v2010 = vlaneseq
    %v2011 = vshrl.u32 %v2010, 7
    %v2012 = vsub.s32 %v2009, %v2011
    %v2013 = vrot.slane %v2006, %v2012
    %v2015 = vunpack.c.l.s4 1983009808
    %v2016 = vunpack.c.0.s8 %v2015
    %v2017 = vlaneseq
    %v2018 = vshrl.u32 %v2017, 7
    %v2019 = vsub.s32 %v2016, %v2018
    %v2020 = vrot.slane %v1764, %v2019
    %v2021 = vcombine.low %v2013, %v2020
    %v2022 = vcombine.low %v1773, %v1781
    %v2024 = vunpack.c.l.s4 1983009808
    %v2025 = vunpack.c.0.s8 %v2024
    %v2026 = vlaneseq
    %v2027 = vshrl.u32 %v2026, 7
    %v2028 = vsub.s32 %v2025, %v2027
    %v2029 = vrot.slane %v2022, %v2028
    %v2031 = vunpack.c.l.s4 1983009808
    %v2032 = vunpack.c.0.s8 %v2031
    %v2033 = vlaneseq
    %v2034 = vshrl.u32 %v2033, 7
    %v2035 = vsub.s32 %v2032, %v2034
    %v2036 = vrot.slane %v1780, %v2035
    %v2037 = vcombine.low %v2029, %v2036
    %v2038 = vcombine.low %v1789, %v1797
    %v2040 = vunpack.c.l.s4 1983009808
    %v2041 = vunpack.c.0.s8 %v2040
    %v2042 = vlaneseq
    %v2043 = vshrl.u32 %v2042, 7
    %v2044 = vsub.s32 %v2041, %v2043
    %v2045 = vrot.slane %v2038, %v2044
    %v2047 = vunpack.c.l.s4 1983009808
    %v2048 = vunpack.c.0.s8 %v2047
    %v2049 = vlaneseq
    %v2050 = vshrl.u32 %v2049, 7
    %v2051 = vsub.s32 %v2048, %v2050
    %v2052 = vrot.slane %v1796, %v2051
    %v2053 = vcombine.low %v2045, %v2052
    %v2054 = vcombine.low %v1805, %v1813
    %v2056 = vunpack.c.l.s4 1983009808
    %v2057 = vunpack.c.0.s8 %v2056
    %v2058 = vlaneseq
    %v2059 = vshrl.u32 %v2058, 7
    %v2060 = vsub.s32 %v2057, %v2059
    %v2061 = vrot.slane %v2054, %v2060
    %v2063 = vunpack.c.l.s4 1983009808
    %v2064 = vunpack.c.0.s8 %v2063
    %v2065 = vlaneseq
    %v2066 = vshrl.u32 %v2065, 7
    %v2067 = vsub.s32 %v2064, %v2066
    %v2068 = vrot.slane %v1812, %v2067
    %v2069 = vcombine.low %v2061, %v2068
    %v2070 = vcombine.low %v1821, %v1829
    %v2072 = vunpack.c.l.s4 1983009808
    %v2073 = vunpack.c.0.s8 %v2072
    %v2074 = vlaneseq
    %v2075 = vshrl.u32 %v2074, 7
    %v2076 = vsub.s32 %v2073, %v2075
    %v2077 = vrot.slane %v2070, %v2076
    %v2079 = vunpack.c.l.s4 1983009808
    %v2080 = vunpack.c.0.s8 %v2079
    %v2081 = vlaneseq
    %v2082 = vshrl.u32 %v2081, 7
    %v2083 = vsub.s32 %v2080, %v2082
    %v2084 = vrot.slane %v1828, %v2083
    %v2085 = vcombine.low %v2077, %v2084
    %v2086 = vcombine.low %v1837, %v1845
    %v2088 = vunpack.c.l.s4 1983009808
    %v2089 = vunpack.c.0.s8 %v2088
    %v2090 = vlaneseq
    %v2091 = vshrl.u32 %v2090, 7
    %v2092 = vsub.s32 %v2089, %v2091
    %v2093 = vrot.slane %v2086, %v2092
    %v2095 = vunpack.c.l.s4 1983009808
    %v2096 = vunpack.c.0.s8 %v2095
    %v2097 = vlaneseq
    %v2098 = vshrl.u32 %v2097, 7
    %v2099 = vsub.s32 %v2096, %v2098
    %v2100 = vrot.slane %v1844, %v2099
    %v2101 = vcombine.low %v2093, %v2100
    %2102 = vset.pattern.permute.xlu0 0
    %2103 = vperm.xlu0 %2102, %v1861
    %v2104 = vpop.permute.xlu0 %2103
    %2105 = vset.pattern.permute.xlu0 0
    %2106 = vperm.xlu0 %2105, %v1877
    %v2107 = vpop.permute.xlu0 %2106
    %2108 = vset.pattern.permute.xlu0 0
    %2109 = vperm.xlu0 %2108, %v1893
    %v2110 = vpop.permute.xlu0 %2109
    %2111 = vset.pattern.permute.xlu0 0
    %2112 = vperm.xlu0 %2111, %v1909
    %v2113 = vpop.permute.xlu0 %2112
    %2114 = vset.pattern.permute.xlu0 0
    %2115 = vperm.xlu0 %2114, %v1925
    %v2116 = vpop.permute.xlu0 %2115
    %2117 = vset.pattern.permute.xlu0 0
    %2118 = vperm.xlu0 %2117, %v1941
    %v2119 = vpop.permute.xlu0 %2118
    %2120 = vset.pattern.permute.xlu0 0
    %2121 = vperm.xlu0 %2120, %v1957
    %v2122 = vpop.permute.xlu0 %2121
    %2123 = vset.pattern.permute.xlu0 0
    %2124 = vperm.xlu0 %2123, %v1973
    %v2125 = vpop.permute.xlu0 %2124
    %2126 = vset.pattern.permute.xlu0 0
    %2127 = vperm.xlu0 %2126, %v1989
    %v2128 = vpop.permute.xlu0 %2127
    %2129 = vset.pattern.permute.xlu0 0
    %2130 = vperm.xlu0 %2129, %v2005
    %v2131 = vpop.permute.xlu0 %2130
    %2132 = vset.pattern.permute.xlu0 0
    %2133 = vperm.xlu0 %2132, %v2021
    %v2134 = vpop.permute.xlu0 %2133
    %2135 = vset.pattern.permute.xlu0 0
    %2136 = vperm.xlu0 %2135, %v2037
    %v2137 = vpop.permute.xlu0 %2136
    %2138 = vset.pattern.permute.xlu0 0
    %2139 = vperm.xlu0 %2138, %v2053
    %v2140 = vpop.permute.xlu0 %2139
    %2141 = vset.pattern.permute.xlu0 0
    %2142 = vperm.xlu0 %2141, %v2069
    %v2143 = vpop.permute.xlu0 %2142
    %2144 = vset.pattern.permute.xlu0 0
    %2145 = vperm.xlu0 %2144, %v2085
    %v2146 = vpop.permute.xlu0 %2145
    %2147 = vset.pattern.permute.xlu0 0
    %2148 = vperm.xlu0 %2147, %v2101
    %v2149 = vpop.permute.xlu0 %2148
    %v2150 = vlaneseq
    %v2151 = vshrl.u32 %v2150, 7
    %v2152 = vsub.s32 %v729, %v2151
    %v2153 = vrot.slane %v2104, %v2152
    %v2154 = vlaneseq
    %v2155 = vshrl.u32 %v2154, 7
    %v2156 = vsub.s32 %v729, %v2155
    %v2157 = vrot.slane %v2107, %v2156
    %v2158 = vlaneseq
    %v2159 = vshrl.u32 %v2158, 7
    %v2160 = vsub.s32 %v729, %v2159
    %v2161 = vrot.slane %v2110, %v2160
    %v2162 = vlaneseq
    %v2163 = vshrl.u32 %v2162, 7
    %v2164 = vsub.s32 %v729, %v2163
    %v2165 = vrot.slane %v2113, %v2164
    %v2166 = vlaneseq
    %v2167 = vshrl.u32 %v2166, 7
    %v2168 = vsub.s32 %v729, %v2167
    %v2169 = vrot.slane %v2116, %v2168
    %v2170 = vlaneseq
    %v2171 = vshrl.u32 %v2170, 7
    %v2172 = vsub.s32 %v729, %v2171
    %v2173 = vrot.slane %v2119, %v2172
    %v2174 = vlaneseq
    %v2175 = vshrl.u32 %v2174, 7
    %v2176 = vsub.s32 %v729, %v2175
    %v2177 = vrot.slane %v2122, %v2176
    %v2178 = vlaneseq
    %v2179 = vshrl.u32 %v2178, 7
    %v2180 = vsub.s32 %v729, %v2179
    %v2181 = vrot.slane %v2125, %v2180
    %v2182 = vlaneseq
    %v2183 = vshrl.u32 %v2182, 7
    %v2184 = vsub.s32 %v729, %v2183
    %v2185 = vrot.slane %v2128, %v2184
    %v2186 = vlaneseq
    %v2187 = vshrl.u32 %v2186, 7
    %v2188 = vsub.s32 %v729, %v2187
    %v2189 = vrot.slane %v2131, %v2188
    %v2190 = vlaneseq
    %v2191 = vshrl.u32 %v2190, 7
    %v2192 = vsub.s32 %v729, %v2191
    %v2193 = vrot.slane %v2134, %v2192
    %v2194 = vlaneseq
    %v2195 = vshrl.u32 %v2194, 7
    %v2196 = vsub.s32 %v729, %v2195
    %v2197 = vrot.slane %v2137, %v2196
    %v2198 = vlaneseq
    %v2199 = vshrl.u32 %v2198, 7
    %v2200 = vsub.s32 %v729, %v2199
    %v2201 = vrot.slane %v2140, %v2200
    %v2202 = vlaneseq
    %v2203 = vshrl.u32 %v2202, 7
    %v2204 = vsub.s32 %v729, %v2203
    %v2205 = vrot.slane %v2143, %v2204
    %v2206 = vlaneseq
    %v2207 = vshrl.u32 %v2206, 7
    %v2208 = vsub.s32 %v729, %v2207
    %v2209 = vrot.slane %v2146, %v2208
    %v2210 = vlaneseq
    %v2211 = vshrl.u32 %v2210, 7
    %v2212 = vsub.s32 %v729, %v2211
    %v2213 = vrot.slane %v2149, %v2212
    %v2214 = vsel %vm794, %v2157, %v2153
    %v2215 = vsel %vm794, %v2165, %v2161
    %v2216 = vsel %vm794, %v2173, %v2169
    %v2217 = vsel %vm794, %v2181, %v2177
    %v2218 = vsel %vm794, %v2189, %v2185
    %v2219 = vsel %vm794, %v2197, %v2193
    %v2220 = vsel %vm794, %v2205, %v2201
    %v2221 = vsel %vm794, %v2213, %v2209
    %v2223 = vunpack.c.l.s4 1983009808
    %v2224 = vunpack.c.0.s8 %v2223
    %v2225 = vlaneseq
    %v2226 = vshrl.u32 %v2225, 7
    %v2227 = vsub.s32 %v2224, %v2226
    %v2228 = vrot.slane %v2214, %v2227
    %v2230 = vunpack.c.l.s4 1983009808
    %v2231 = vunpack.c.0.s8 %v2230
    %v2232 = vlaneseq
    %v2233 = vshrl.u32 %v2232, 7
    %v2234 = vsub.s32 %v2231, %v2233
    %v2235 = vrot.slane %v2215, %v2234
    %v2237 = vunpack.c.l.s4 1983009808
    %v2238 = vunpack.c.0.s8 %v2237
    %v2239 = vlaneseq
    %v2240 = vshrl.u32 %v2239, 7
    %v2241 = vsub.s32 %v2238, %v2240
    %v2242 = vrot.slane %v2216, %v2241
    %v2244 = vunpack.c.l.s4 1983009808
    %v2245 = vunpack.c.0.s8 %v2244
    %v2246 = vlaneseq
    %v2247 = vshrl.u32 %v2246, 7
    %v2248 = vsub.s32 %v2245, %v2247
    %v2249 = vrot.slane %v2217, %v2248
    %v2251 = vunpack.c.l.s4 1983009808
    %v2252 = vunpack.c.0.s8 %v2251
    %v2253 = vlaneseq
    %v2254 = vshrl.u32 %v2253, 7
    %v2255 = vsub.s32 %v2252, %v2254
    %v2256 = vrot.slane %v2218, %v2255
    %v2258 = vunpack.c.l.s4 1983009808
    %v2259 = vunpack.c.0.s8 %v2258
    %v2260 = vlaneseq
    %v2261 = vshrl.u32 %v2260, 7
    %v2262 = vsub.s32 %v2259, %v2261
    %v2263 = vrot.slane %v2219, %v2262
    %v2265 = vunpack.c.l.s4 1983009808
    %v2266 = vunpack.c.0.s8 %v2265
    %v2267 = vlaneseq
    %v2268 = vshrl.u32 %v2267, 7
    %v2269 = vsub.s32 %v2266, %v2268
    %v2270 = vrot.slane %v2220, %v2269
    %v2272 = vunpack.c.l.s4 1983009808
    %v2273 = vunpack.c.0.s8 %v2272
    %v2274 = vlaneseq
    %v2275 = vshrl.u32 %v2274, 7
    %v2276 = vsub.s32 %v2273, %v2275
    %v2277 = vrot.slane %v2221, %v2276
    %v2286 = vmul.f32 %v1496, %v2228
    %v2287 = vmul.f32 %v1507, %v2235
    %v2288 = vmul.f32 %v1518, %v2242
    %v2289 = vmul.f32 %v1529, %v2249
    %v2290 = vmul.f32 %v1540, %v2256
    %v2291 = vmul.f32 %v1551, %v2263
    %v2292 = vmul.f32 %v1562, %v2270
    %v2293 = vmul.f32 %v1573, %v2277
    %2294 = vst.msk [vmem:[%s8] sm:$0x3] %vm811, %v2286
    %2295 = vst.msk [vmem:[%s8 + $0x2] sm:$0x3] %vm811, %v2287
    %2296 = vst.msk [vmem:[%s8 + $0x4] sm:$0x3] %vm811, %v2288
    %2297 = vst.msk [vmem:[%s8 + $0x6] sm:$0x3] %vm811, %v2289
    %2298 = vst.msk [vmem:[%s8 + $0x8] sm:$0x3] %vm811, %v2290
    %2299 = vst.msk [vmem:[%s8 + $0xa] sm:$0x3] %vm811, %v2291
    %2300 = vst.msk [vmem:[%s8 + $0xc] sm:$0x3] %vm811, %v2292
    %2301 = vst.msk [vmem:[%s8 + $0xe] sm:$0x3] %vm811, %v2293
    // Predicated region
    $region30: #{tpu_custom_call.1} parent=1 // pred_check
      _
    $region31: #{tpu_custom_call.1} parent=1 // pred_check_branch
      %2303 = sbr.rel (0) target = $region33
    $region32: #{tpu_custom_call.1} parent=1 // pred_region
      %s2305 = ssub.s32 256, 256
      %2306 = vsyncadd [#allocation4], %s2305
      %s2307 = sshll.u32 [#allocation5], 4
      %s2308 = int_to_ptr.vmem [resolvable:$true] %s2307
      %2313 = dma.vmem_to_hbm [thread:$0]  %s2308, 256, %s6, [#allocation4], 32, 32, 2
    $region33: #{tpu_custom_call.1} parent=1 // pred_fallthru
      _
    // Predicated region
    $region34: #{tpu_custom_call.1} parent=1 // pred_check
      _
    $region35: #{tpu_custom_call.1} parent=1 // pred_check_branch
      %2315 = sbr.rel (0) target = $region37
    $region36: #{tpu_custom_call.1} parent=1 // pred_region
      %s2317 = ssub.s32 256, 256
      %2318 = vsyncadd [#allocation7], %s2317
      %s2319 = sshll.u32 [#allocation6], 4
      %s2320 = int_to_ptr.vmem [resolvable:$true] %s2319
      %2325 = dma.vmem_to_hbm [thread:$0]  %s2320, 256, %s7, [#allocation7], 32, 32, 2
    $region37: #{tpu_custom_call.1} parent=1 // pred_fallthru
      _
    // Predicated region
    $region38: #{tpu_custom_call.1} parent=1 // pred_check
      _
    $region39: #{tpu_custom_call.1} parent=1 // pred_check_branch
      %2327 = sbr.rel (0) target = $region41
    $region40: #{tpu_custom_call.1} parent=1 // pred_region
      _
    $region41: #{tpu_custom_call.1} parent=1 // pred_fallthru
      _
    // Predicated region
    $region42: #{tpu_custom_call.1} parent=1 // pred_check
      _
    $region43: #{tpu_custom_call.1} parent=1 // pred_check_branch
      %2329 = sbr.rel (0) target = $region45
    $region44: #{tpu_custom_call.1} parent=1 // pred_region
      %2330 = dma.done [#allocation4], 256
    $region45: #{tpu_custom_call.1} parent=1 // pred_fallthru
      _
    // Predicated region
    $region46: #{tpu_custom_call.1} parent=1 // pred_check
      _
    $region47: #{tpu_custom_call.1} parent=1 // pred_check_branch
      %2332 = sbr.rel (0) target = $region49
    $region48: #{tpu_custom_call.1} parent=1 // pred_region
      %2333 = dma.done [#allocation7], 256
    $region49: #{tpu_custom_call.1} parent=1 // pred_fallthru
      _
    // Predicated region
    $region50: #{tpu_custom_call.1} parent=1 // pred_check
      _
    $region51: #{tpu_custom_call.1} parent=1 // pred_check_branch
      %2335 = sbr.rel (0) target = $region53
    $region52: #{tpu_custom_call.1} parent=1 // pred_region
      _
    $region53: #{tpu_custom_call.1} parent=1 // pred_fallthru
      _
    %2336 = vsyncpa [#allocation3], 1
    %2337 = vsyncpa [#allocation4], 1
    %2338 = vsyncpa [#allocation7], 1

</llo_original>
